<compile_context>
chip_gen: v7x
topology: tpu7x:2x2x1
jax: 0.10.0
libtpu: 0.0.40
codegen_flags: <defaults>
</compile_context>

<pallas_src>
import jax
import jax.numpy as jnp
from jax.experimental import pallas as pl
from jax.experimental.pallas import tpu as pltpu


TILE_M_MAX = 256            # aggregation row tile ("parallel" axis)
TILE_K_MAX = 4096           # aggregation reduction tile (bf16 A stream)
TILE_E_MAX = 2048           # edge-row tile for the edge MLP
LANE_PAD = 128              # pad class dim so the final store is lane-dense
_VMEM_LIMIT = 32 * 1024 * 1024   # safe for v7x's 64 MiB physical VMEM as well


def _round_up(x, m):
    return ((x + m - 1) // m) * m


# ------------------------------------------------------------------ kernels --

def gin_layer_kernel(a_ref, xk_ref, xi_ref, w_ref, b_ref, o_ref, acc_ref):
    """Tiled GINConv (eps=0) + ReLU:  o[i] = relu((x[i] + sum_k A[i,k] @ x[k]) @ W + b).

    acc_ref holds the running A@x partial sum, shape (tile_m, f_in), f32.
    """
    k = pl.program_id(1)

    @pl.when(k == 0)
    def _():
        acc_ref[...] = jnp.zeros_like(acc_ref)

    # Native bf16 MXU path: A tile is already bf16; cast only the small
    # (tile_k, f_in) x tile to bf16.  Accumulation stays f32.
    acc_ref[...] += jnp.dot(a_ref[...], xk_ref[...].astype(jnp.bfloat16),
                            preferred_element_type=jnp.float32)

    @pl.when(k == pl.num_programs(1) - 1)
    def _():
        h = xi_ref[...] + acc_ref[...]                      # (1+eps)*x + agg, eps=0 (f32)
        y = jnp.dot(h, w_ref[...], preferred_element_type=jnp.float32) + b_ref[...]
        o_ref[...] = jnp.maximum(y, 0.0)


def edge_mlp_kernel(xs_ref, xd_ref, w1s_ref, w1d_ref, b1_ref, w2_ref, b2_ref, o_ref):
    """fc1 (split src/dst halves, no concat) + ReLU + fc2 (lane-padded) + log_softmax."""
    h = (jnp.dot(xs_ref[...], w1s_ref[...], preferred_element_type=jnp.float32)
         + jnp.dot(xd_ref[...], w1d_ref[...], preferred_element_type=jnp.float32)
         + b1_ref[...])
    h = jnp.maximum(h, 0.0)
    logits = jnp.dot(h, w2_ref[...], preferred_element_type=jnp.float32) + b2_ref[...]
    # Padded class columns carry a -1e30 f32 bias -> exp() == 0, so they never
    # affect the max or the log-sum-exp of the real classes.
    m = jnp.max(logits, axis=-1, keepdims=True)
    z = logits - m
    lse = jnp.log(jnp.sum(jnp.exp(z), axis=-1, keepdims=True))
    o_ref[...] = z - lse


# ----------------------------------------------------------------- wrappers --

def gin_layer(a_bf16, x, w, b, tile_m, tile_k):
    n_pad, f_in = x.shape
    h = w.shape[1]
    grid = (n_pad // tile_m, n_pad // tile_k)
    return pl.pallas_call(
        gin_layer_kernel,
        out_shape=jax.ShapeDtypeStruct((n_pad, h), jnp.float32),
        grid_spec=pltpu.PrefetchScalarGridSpec(
            num_scalar_prefetch=0,
            grid=grid,
            in_specs=[
                pl.BlockSpec((tile_m, tile_k), lambda i, k: (i, k)),   # A tile (bf16)
                pl.BlockSpec((tile_k, f_in), lambda i, k: (k, 0)),     # x rows (reduction)
                pl.BlockSpec((tile_m, f_in), lambda i, k: (i, 0)),     # x rows (self term)
                pl.BlockSpec((f_in, h), lambda i, k: (0, 0)),          # W, resident
                pl.BlockSpec((1, h), lambda i, k: (0, 0)),             # b, resident
            ],
            out_specs=pl.BlockSpec((tile_m, h), lambda i, k: (i, 0)),
            scratch_shapes=[pltpu.VMEM((tile_m, f_in), jnp.float32)],  # A@x accumulator
        ),
        compiler_params=pltpu.CompilerParams(
            dimension_semantics=("parallel", "arbitrary"),
            vmem_limit_bytes=_VMEM_LIMIT,
        ),
    )(a_bf16, x, x, w, b)


def edge_mlp(xs, xd, w1s, w1d, b1, w2p, b2p, tile_e):
    e_pad, h = xs.shape
    c_pad = w2p.shape[1]
    grid = (e_pad // tile_e,)
    return pl.pallas_call(
        edge_mlp_kernel,
        out_shape=jax.ShapeDtypeStruct((e_pad, c_pad), jnp.float32),
        grid_spec=pltpu.PrefetchScalarGridSpec(
            num_scalar_prefetch=0,
            grid=grid,
            in_specs=[
                pl.BlockSpec((tile_e, h), lambda i: (i, 0)),           # x2[src] tile
                pl.BlockSpec((tile_e, h), lambda i: (i, 0)),           # x2[dst] tile
                pl.BlockSpec((h, w1s.shape[1]), lambda i: (0, 0)),     # W1 src half
                pl.BlockSpec((h, w1d.shape[1]), lambda i: (0, 0)),     # W1 dst half
                pl.BlockSpec((1, b1.shape[1]), lambda i: (0, 0)),      # b1
                pl.BlockSpec((w2p.shape[0], c_pad), lambda i: (0, 0)), # W2 (lane-padded)
                pl.BlockSpec((1, c_pad), lambda i: (0, 0)),            # b2 (lane-padded)
            ],
            out_specs=pl.BlockSpec((tile_e, c_pad), lambda i: (i, 0)),
        ),
        compiler_params=pltpu.CompilerParams(
            dimension_semantics=("parallel",),
            vmem_limit_bytes=_VMEM_LIMIT,
        ),
    )(xs, xd, w1s, w1d, b1, w2p, b2p)


def gin2_forward(x, edge_index, params):
    """Full GIN2 forward: returns log-probabilities of shape [E, num_classes]."""
    n, f = x.shape
    src = edge_index[0].astype(jnp.int32)
    dst = edge_index[1].astype(jnp.int32)
    e = src.shape[0]
    c = params["w_fc2"].shape[1]
    hid = params["w_fc2"].shape[0]

    # Tile sizing: n_pad is a multiple of 256 so tile_m in {128, 256} always
    # divides it; pick the largest reduction tile (<= 4096) that divides n_pad.
    n_pad = _round_up(n, 256)
    tile_m = min(TILE_M_MAX, n_pad // 2)     # >= 2 row tiles (keeps v7x's 2nd TC busy)
    tile_k = max(t for t in (TILE_K_MAX, 2048, 1024, 512, 256) if n_pad % t == 0)

    # Dense adjacency (GINConv scatter-add as a matmul), built directly in bf16
    # (exact for per-edge multiplicities up to 256) -> no N^2 f32 intermediate.
    a = jnp.zeros((n_pad, n_pad), jnp.bfloat16).at[dst, src].add(1.0)

    x_pad = jnp.zeros((n_pad, f), jnp.float32).at[:n].set(x)

    x1 = gin_layer(a, x_pad, params["w_conv1"], params["b_conv1"], tile_m, tile_k)
    x2 = gin_layer(a, x1, params["w_conv2"], params["b_conv2"], tile_m, tile_k)

    # Edge-endpoint row gather stays in XLA (data-dependent gather); the concat
    # is eliminated by splitting W_fc1 into src/dst halves inside the kernel.
    # TODO(synk): move this gather in-kernel via scalar-prefetched indices.
    tile_e = min(TILE_E_MAX, _round_up(e, 128))
    e_pad = _round_up(e, tile_e)
    src_pad = jnp.zeros((e_pad,), jnp.int32).at[:e].set(src)
    dst_pad = jnp.zeros((e_pad,), jnp.int32).at[:e].set(dst)
    xs = jnp.take(x2, src_pad, axis=0)
    xd = jnp.take(x2, dst_pad, axis=0)

    w1 = params["w_fc1"]
    w1s, w1d = w1[:hid], w1[hid:]

    # Pad fc2 outputs to 128 lanes so the final store is lane-dense; padded
    # columns get a huge negative f32 bias so they never influence log_softmax.
    w2p = jnp.zeros((hid, LANE_PAD), jnp.float32).at[:, :c].set(params["w_fc2"])
    b2p = jnp.full((1, LANE_PAD), -1e30, jnp.float32).at[:, :c].set(params["b_fc2"])

    out = edge_mlp(xs, xd, w1s, w1d, params["b_fc1"], w2p, b2p, tile_e)
    return out[:e, :c]


# --------------------------------------------------------------------- main --

def init_params(key, num_features, num_classes):
    """Deterministic init. Weights stored as (in, out) so kernels do x @ W + b."""
    ks = jax.random.split(key, 8)

    def lin(kw, kb, fan_in, fan_out):
        bound = 1.0 / jnp.sqrt(fan_in)
        w = jax.random.uniform(kw, (fan_in, fan_out), jnp.float32, -bound, bound)
        b = jax.random.uniform(kb, (1, fan_out), jnp.float32, -bound, bound)
        return w, b

    w_conv1, b_conv1 = lin(ks[0], ks[1], num_features, 16)
    w_conv2, b_conv2 = lin(ks[2], ks[3], 16, 16)
    w_fc1, b_fc1 = lin(ks[4], ks[5], 2 * 16, 16)
    w_fc2, b_fc2 = lin(ks[6], ks[7], 16, num_classes)
    return dict(w_conv1=w_conv1, b_conv1=b_conv1,
                w_conv2=w_conv2, b_conv2=b_conv2,
                w_fc1=w_fc1, b_fc1=b_fc1,
                w_fc2=w_fc2, b_fc2=b_fc2)


def ref_forward(x, edge_index, p, bf16_agg):
    """Pure-JAX reference.  bf16_agg=True mirrors the kernel's bf16 A@x feed."""
    n = x.shape[0]
    src, dst = edge_index[0], edge_index[1]
    adt = jnp.bfloat16 if bf16_agg else jnp.float32
    a = jnp.zeros((n, n), jnp.float32).at[dst, src].add(1.0).astype(adt)

    def agg(h):
        return jnp.dot(a, h.astype(adt), preferred_element_type=jnp.float32)

    h = jnp.maximum((x + agg(x)) @ p["w_conv1"] + p["b_conv1"], 0.0)
    h = jnp.maximum((h + agg(h)) @ p["w_conv2"] + p["b_conv2"], 0.0)
    ef = jnp.concatenate([h[src], h[dst]], axis=1)
    ef = jnp.maximum(ef @ p["w_fc1"] + p["b_fc1"], 0.0)
    logits = ef @ p["w_fc2"] + p["b_fc2"]
    return jax.nn.log_softmax(logits, axis=1)


if __name__ == "__main__":
    num_nodes = 16
    num_features = 8
    num_classes = 2
    num_edges = 32

    key = jax.random.PRNGKey(0)
    kx, ke, kp = jax.random.split(key, 3)

    x = jax.random.normal(kx, (num_nodes, num_features), jnp.float32)
    edge_index = jax.random.randint(ke, (2, num_edges), 0, num_nodes, jnp.int32)
    params = init_params(kp, num_features, num_classes)

    out = jax.jit(gin2_forward)(x, edge_index, params)
    jax.block_until_ready(out)
    assert out.shape == (num_edges, num_classes)

    # Tight check against a reference using the same bf16 aggregation feed.
    ref_bf16 = ref_forward(x, edge_index, params, bf16_agg=True)
    assert jnp.allclose(out, ref_bf16, atol=2e-3, rtol=2e-3)

    # Loose check against the exact f32 semantics (bf16 agg feed drifts ~1e-3).
    ref_f32 = ref_forward(x, edge_index, params, bf16_agg=False)
    assert float(jnp.max(jnp.abs(out - ref_f32))) < 0.2

    print("KERNEL_OK")
</pallas_src>

<mosaic_0001>
module attributes {stable_mosaic.version = 11 : i64} {
  func.func @gin_layer_kernel(%arg0: i32, %arg1: i32, %arg2: memref<128x256xbf16, #tpu.memory_space<vmem>>, %arg3: memref<256x8xf32, #tpu.memory_space<vmem>>, %arg4: memref<128x8xf32, #tpu.memory_space<vmem>>, %arg5: memref<8x16xf32, #tpu.memory_space<vmem>>, %arg6: memref<1x16xf32, #tpu.memory_space<vmem>>, %arg7: memref<128x16xf32, #tpu.memory_space<vmem>>, %arg8: memref<128x8xf32, #tpu.memory_space<vmem>>) attributes {dimension_semantics = [#tpu.dimension_semantics<parallel>, #tpu.dimension_semantics<arbitrary>], iteration_bounds = array<i64: 2, 1>, scalar_prefetch = 0 : i64, scratch_operands = 1 : i64, tpu.core_type = #tpu.core_type<tc>, window_params = [{transform_indices = @transform_0, window_bounds = array<i64: 128, 256>}, {transform_indices = @transform_1, window_bounds = array<i64: 256, 8>}, {transform_indices = @transform_2, window_bounds = array<i64: 128, 8>}, {pipeline_mode = #tpu.pipeline_mode<synchronous>, transform_indices = @transform_3, window_bounds = array<i64: 8, 16>}, {pipeline_mode = #tpu.pipeline_mode<synchronous>, transform_indices = @transform_4, window_bounds = array<i64: 1, 16>}, {transform_indices = @transform_5, window_bounds = array<i64: 128, 16>}]} {
    %c0_i32 = arith.constant 0 : i32
    %0 = arith.cmpi eq, %arg1, %c0_i32 : i32
    %1 = arith.extui %0 : i1 to i32
    %c0_i32_0 = arith.constant 0 : i32
    %2 = arith.cmpi ne, %1, %c0_i32_0 : i32
    scf.if %2 {
      %cst_10 = arith.constant 0.000000e+00 : f32
      %13 = vector.broadcast %cst_10 : f32 to vector<128x8xf32>
      %c0_11 = arith.constant 0 : index
      %c0_12 = arith.constant 0 : index
      %14 = vector.load %arg8[%c0_11, %c0_12] : memref<128x8xf32, #tpu.memory_space<vmem>>, vector<128x8xf32>
      tpu.vector_store %arg8[%c0_11, %c0_12], %13 {strides = array<i32>} : memref<128x8xf32, #tpu.memory_space<vmem>>, vector<128x8xf32>,
    } else {
    }
    %c0 = arith.constant 0 : index
    %c0_1 = arith.constant 0 : index
    %3 = vector.load %arg8[%c0, %c0_1] : memref<128x8xf32, #tpu.memory_space<vmem>>, vector<128x8xf32>
    %c0_2 = arith.constant 0 : index
    %c0_3 = arith.constant 0 : index
    %4 = vector.load %arg2[%c0_2, %c0_3] : memref<128x256xbf16, #tpu.memory_space<vmem>>, vector<128x256xbf16>
    %c0_4 = arith.constant 0 : index
    %c0_5 = arith.constant 0 : index
    %5 = vector.load %arg3[%c0_4, %c0_5] : memref<256x8xf32, #tpu.memory_space<vmem>>, vector<256x8xf32>
    %6 = arith.truncf %5 : vector<256x8xf32> to vector<256x8xbf16>
    %cst = arith.constant dense<0.000000e+00> : vector<128x8xf32>
    %7 = tpu.matmul %4, %6, %cst {dimension_numbers = #tpu.dot_dimension_numbers<[1], [0], [0], [1], [0, 0, 1, 1], [], []>} : vector<128x256xbf16>, vector<256x8xbf16>, vector<128x8xf32> -> vector<128x8xf32>
    %8 = arith.addf %3, %7 : vector<128x8xf32>
    %c0_6 = arith.constant 0 : index
    %c0_7 = arith.constant 0 : index
    %9 = vector.load %arg8[%c0_6, %c0_7] : memref<128x8xf32, #tpu.memory_space<vmem>>, vector<128x8xf32>
    tpu.vector_store %arg8[%c0_6, %c0_7], %8 {strides = array<i32>} : memref<128x8xf32, #tpu.memory_space<vmem>>, vector<128x8xf32>,
    %c0_i32_8 = arith.constant 0 : i32
    %10 = arith.cmpi eq, %arg1, %c0_i32_8 : i32
    %11 = arith.extui %10 : i1 to i32
    %c0_i32_9 = arith.constant 0 : i32
    %12 = arith.cmpi ne, %11, %c0_i32_9 : i32
    scf.if %12 {
      %c0_10 = arith.constant 0 : index
      %c0_11 = arith.constant 0 : index
      %13 = vector.load %arg4[%c0_10, %c0_11] : memref<128x8xf32, #tpu.memory_space<vmem>>, vector<128x8xf32>
      %c0_12 = arith.constant 0 : index
      %c0_13 = arith.constant 0 : index
      %14 = vector.load %arg8[%c0_12, %c0_13] : memref<128x8xf32, #tpu.memory_space<vmem>>, vector<128x8xf32>
      %15 = arith.addf %13, %14 : vector<128x8xf32>
      %c0_14 = arith.constant 0 : index
      %c0_15 = arith.constant 0 : index
      %16 = vector.load %arg5[%c0_14, %c0_15] : memref<8x16xf32, #tpu.memory_space<vmem>>, vector<8x16xf32>
      %cst_16 = arith.constant dense<0.000000e+00> : vector<128x16xf32>
      %17 = tpu.matmul %15, %16, %cst_16 {dimension_numbers = #tpu.dot_dimension_numbers<[1], [0], [0], [1], [0, 0, 1, 1], [], []>} : vector<128x8xf32>, vector<8x16xf32>, vector<128x16xf32> -> vector<128x16xf32>
      %c0_17 = arith.constant 0 : index
      %c0_18 = arith.constant 0 : index
      %18 = vector.load %arg6[%c0_17, %c0_18] : memref<1x16xf32, #tpu.memory_space<vmem>>, vector<1x16xf32>
      %19 = vector.broadcast %18 : vector<1x16xf32> to vector<128x16xf32>
      %20 = arith.addf %17, %19 : vector<128x16xf32>
      %cst_19 = arith.constant 0.000000e+00 : f32
      %21 = vector.broadcast %cst_19 : f32 to vector<128x16xf32>
      %22 = arith.maximumf %20, %21 : vector<128x16xf32>
      %c0_20 = arith.constant 0 : index
      %c0_21 = arith.constant 0 : index
      %23 = vector.load %arg7[%c0_20, %c0_21] : memref<128x16xf32, #tpu.memory_space<vmem>>, vector<128x16xf32>
      tpu.vector_store %arg7[%c0_20, %c0_21], %22 {strides = array<i32>} : memref<128x16xf32, #tpu.memory_space<vmem>>, vector<128x16xf32>,
    } else {
    }
    return
  }
  func.func @transform_0(%arg0: i32, %arg1: i32) -> (i32, i32) {
    %c0_i32 = arith.constant 0 : i32
    return %arg0, %arg1 : i32, i32
  }
  func.func @transform_1(%arg0: i32, %arg1: i32) -> (i32, i32) {
    %c0_i32 = arith.constant 0 : i32
    %c0_i32_0 = arith.constant 0 : i32
    return %arg1, %c0_i32 : i32, i32
  }
  func.func @transform_2(%arg0: i32, %arg1: i32) -> (i32, i32) {
    %c0_i32 = arith.constant 0 : i32
    %c0_i32_0 = arith.constant 0 : i32
    return %arg0, %c0_i32 : i32, i32
  }
  func.func @transform_3(%arg0: i32, %arg1: i32) -> (i32, i32) {
    %c0_i32 = arith.constant 0 : i32
    %c0_i32_0 = arith.constant 0 : i32
    %c0_i32_1 = arith.constant 0 : i32
    return %c0_i32, %c0_i32_0 : i32, i32
  }
  func.func @transform_4(%arg0: i32, %arg1: i32) -> (i32, i32) {
    %c0_i32 = arith.constant 0 : i32
    %c0_i32_0 = arith.constant 0 : i32
    %c0_i32_1 = arith.constant 0 : i32
    return %c0_i32, %c0_i32_0 : i32, i32
  }
  func.func @transform_5(%arg0: i32, %arg1: i32) -> (i32, i32) {
    %c0_i32 = arith.constant 0 : i32
    %c0_i32_0 = arith.constant 0 : i32
    return %arg0, %c0_i32 : i32, i32
  }
}

module attributes {stable_mosaic.version = 11 : i64} {
  func.func @gin_layer_kernel(%arg0: i32, %arg1: i32, %arg2: memref<128x256xbf16, #tpu.memory_space<vmem>>, %arg3: memref<256x16xf32, #tpu.memory_space<vmem>>, %arg4: memref<128x16xf32, #tpu.memory_space<vmem>>, %arg5: memref<16x16xf32, #tpu.memory_space<vmem>>, %arg6: memref<1x16xf32, #tpu.memory_space<vmem>>, %arg7: memref<128x16xf32, #tpu.memory_space<vmem>>, %arg8: memref<128x16xf32, #tpu.memory_space<vmem>>) attributes {dimension_semantics = [#tpu.dimension_semantics<parallel>, #tpu.dimension_semantics<arbitrary>], iteration_bounds = array<i64: 2, 1>, scalar_prefetch = 0 : i64, scratch_operands = 1 : i64, tpu.core_type = #tpu.core_type<tc>, window_params = [{transform_indices = @transform_0, window_bounds = array<i64: 128, 256>}, {transform_indices = @transform_1, window_bounds = array<i64: 256, 16>}, {transform_indices = @transform_2, window_bounds = array<i64: 128, 16>}, {pipeline_mode = #tpu.pipeline_mode<synchronous>, transform_indices = @transform_3, window_bounds = array<i64: 16, 16>}, {pipeline_mode = #tpu.pipeline_mode<synchronous>, transform_indices = @transform_4, window_bounds = array<i64: 1, 16>}, {transform_indices = @transform_5, window_bounds = array<i64: 128, 16>}]} {
    %c0_i32 = arith.constant 0 : i32
    %0 = arith.cmpi eq, %arg1, %c0_i32 : i32
    %1 = arith.extui %0 : i1 to i32
    %c0_i32_0 = arith.constant 0 : i32
    %2 = arith.cmpi ne, %1, %c0_i32_0 : i32
    scf.if %2 {
      %cst_10 = arith.constant 0.000000e+00 : f32
      %13 = vector.broadcast %cst_10 : f32 to vector<128x16xf32>
      %c0_11 = arith.constant 0 : index
      %c0_12 = arith.constant 0 : index
      %14 = vector.load %arg8[%c0_11, %c0_12] : memref<128x16xf32, #tpu.memory_space<vmem>>, vector<128x16xf32>
      tpu.vector_store %arg8[%c0_11, %c0_12], %13 {strides = array<i32>} : memref<128x16xf32, #tpu.memory_space<vmem>>, vector<128x16xf32>,
    } else {
    }
    %c0 = arith.constant 0 : index
    %c0_1 = arith.constant 0 : index
    %3 = vector.load %arg8[%c0, %c0_1] : memref<128x16xf32, #tpu.memory_space<vmem>>, vector<128x16xf32>
    %c0_2 = arith.constant 0 : index
    %c0_3 = arith.constant 0 : index
    %4 = vector.load %arg2[%c0_2, %c0_3] : memref<128x256xbf16, #tpu.memory_space<vmem>>, vector<128x256xbf16>
    %c0_4 = arith.constant 0 : index
    %c0_5 = arith.constant 0 : index
    %5 = vector.load %arg3[%c0_4, %c0_5] : memref<256x16xf32, #tpu.memory_space<vmem>>, vector<256x16xf32>
    %6 = arith.truncf %5 : vector<256x16xf32> to vector<256x16xbf16>
    %cst = arith.constant dense<0.000000e+00> : vector<128x16xf32>
    %7 = tpu.matmul %4, %6, %cst {dimension_numbers = #tpu.dot_dimension_numbers<[1], [0], [0], [1], [0, 0, 1, 1], [], []>} : vector<128x256xbf16>, vector<256x16xbf16>, vector<128x16xf32> -> vector<128x16xf32>
    %8 = arith.addf %3, %7 : vector<128x16xf32>
    %c0_6 = arith.constant 0 : index
    %c0_7 = arith.constant 0 : index
    %9 = vector.load %arg8[%c0_6, %c0_7] : memref<128x16xf32, #tpu.memory_space<vmem>>, vector<128x16xf32>
    tpu.vector_store %arg8[%c0_6, %c0_7], %8 {strides = array<i32>} : memref<128x16xf32, #tpu.memory_space<vmem>>, vector<128x16xf32>,
    %c0_i32_8 = arith.constant 0 : i32
    %10 = arith.cmpi eq, %arg1, %c0_i32_8 : i32
    %11 = arith.extui %10 : i1 to i32
    %c0_i32_9 = arith.constant 0 : i32
    %12 = arith.cmpi ne, %11, %c0_i32_9 : i32
    scf.if %12 {
      %c0_10 = arith.constant 0 : index
      %c0_11 = arith.constant 0 : index
      %13 = vector.load %arg4[%c0_10, %c0_11] : memref<128x16xf32, #tpu.memory_space<vmem>>, vector<128x16xf32>
      %c0_12 = arith.constant 0 : index
      %c0_13 = arith.constant 0 : index
      %14 = vector.load %arg8[%c0_12, %c0_13] : memref<128x16xf32, #tpu.memory_space<vmem>>, vector<128x16xf32>
      %15 = arith.addf %13, %14 : vector<128x16xf32>
      %c0_14 = arith.constant 0 : index
      %c0_15 = arith.constant 0 : index
      %16 = vector.load %arg5[%c0_14, %c0_15] : memref<16x16xf32, #tpu.memory_space<vmem>>, vector<16x16xf32>
      %cst_16 = arith.constant dense<0.000000e+00> : vector<128x16xf32>
      %17 = tpu.matmul %15, %16, %cst_16 {dimension_numbers = #tpu.dot_dimension_numbers<[1], [0], [0], [1], [0, 0, 1, 1], [], []>} : vector<128x16xf32>, vector<16x16xf32>, vector<128x16xf32> -> vector<128x16xf32>
      %c0_17 = arith.constant 0 : index
      %c0_18 = arith.constant 0 : index
      %18 = vector.load %arg6[%c0_17, %c0_18] : memref<1x16xf32, #tpu.memory_space<vmem>>, vector<1x16xf32>
      %19 = vector.broadcast %18 : vector<1x16xf32> to vector<128x16xf32>
      %20 = arith.addf %17, %19 : vector<128x16xf32>
      %cst_19 = arith.constant 0.000000e+00 : f32
      %21 = vector.broadcast %cst_19 : f32 to vector<128x16xf32>
      %22 = arith.maximumf %20, %21 : vector<128x16xf32>
      %c0_20 = arith.constant 0 : index
      %c0_21 = arith.constant 0 : index
      %23 = vector.load %arg7[%c0_20, %c0_21] : memref<128x16xf32, #tpu.memory_space<vmem>>, vector<128x16xf32>
      tpu.vector_store %arg7[%c0_20, %c0_21], %22 {strides = array<i32>} : memref<128x16xf32, #tpu.memory_space<vmem>>, vector<128x16xf32>,
    } else {
    }
    return
  }
  func.func @transform_0(%arg0: i32, %arg1: i32) -> (i32, i32) {
    %c0_i32 = arith.constant 0 : i32
    return %arg0, %arg1 : i32, i32
  }
  func.func @transform_1(%arg0: i32, %arg1: i32) -> (i32, i32) {
    %c0_i32 = arith.constant 0 : i32
    %c0_i32_0 = arith.constant 0 : i32
    return %arg1, %c0_i32 : i32, i32
  }
  func.func @transform_2(%arg0: i32, %arg1: i32) -> (i32, i32) {
    %c0_i32 = arith.constant 0 : i32
    %c0_i32_0 = arith.constant 0 : i32
    return %arg0, %c0_i32 : i32, i32
  }
  func.func @transform_3(%arg0: i32, %arg1: i32) -> (i32, i32) {
    %c0_i32 = arith.constant 0 : i32
    %c0_i32_0 = arith.constant 0 : i32
    %c0_i32_1 = arith.constant 0 : i32
    return %c0_i32, %c0_i32_0 : i32, i32
  }
  func.func @transform_4(%arg0: i32, %arg1: i32) -> (i32, i32) {
    %c0_i32 = arith.constant 0 : i32
    %c0_i32_0 = arith.constant 0 : i32
    %c0_i32_1 = arith.constant 0 : i32
    return %c0_i32, %c0_i32_0 : i32, i32
  }
  func.func @transform_5(%arg0: i32, %arg1: i32) -> (i32, i32) {
    %c0_i32 = arith.constant 0 : i32
    %c0_i32_0 = arith.constant 0 : i32
    return %arg0, %c0_i32 : i32, i32
  }
}

module attributes {stable_mosaic.version = 11 : i64} {
  func.func @edge_mlp_kernel(%arg0: i32, %arg1: memref<128x16xf32, #tpu.memory_space<vmem>>, %arg2: memref<128x16xf32, #tpu.memory_space<vmem>>, %arg3: memref<16x16xf32, #tpu.memory_space<vmem>>, %arg4: memref<16x16xf32, #tpu.memory_space<vmem>>, %arg5: memref<1x16xf32, #tpu.memory_space<vmem>>, %arg6: memref<16x128xf32, #tpu.memory_space<vmem>>, %arg7: memref<1x128xf32, #tpu.memory_space<vmem>>, %arg8: memref<128x128xf32, #tpu.memory_space<vmem>>) attributes {dimension_semantics = [#tpu.dimension_semantics<parallel>], iteration_bounds = array<i64: 1>, scalar_prefetch = 0 : i64, scratch_operands = 0 : i64, tpu.core_type = #tpu.core_type<tc>, window_params = [{transform_indices = @transform_0, window_bounds = array<i64: 128, 16>}, {transform_indices = @transform_1, window_bounds = array<i64: 128, 16>}, {pipeline_mode = #tpu.pipeline_mode<synchronous>, transform_indices = @transform_2, window_bounds = array<i64: 16, 16>}, {pipeline_mode = #tpu.pipeline_mode<synchronous>, transform_indices = @transform_3, window_bounds = array<i64: 16, 16>}, {pipeline_mode = #tpu.pipeline_mode<synchronous>, transform_indices = @transform_4, window_bounds = array<i64: 1, 16>}, {pipeline_mode = #tpu.pipeline_mode<synchronous>, transform_indices = @transform_5, window_bounds = array<i64: 16, 128>}, {pipeline_mode = #tpu.pipeline_mode<synchronous>, transform_indices = @transform_6, window_bounds = array<i64: 1, 128>}, {transform_indices = @transform_7, window_bounds = array<i64: 128, 128>}]} {
    %c0 = arith.constant 0 : index
    %c0_0 = arith.constant 0 : index
    %0 = vector.load %arg1[%c0, %c0_0] : memref<128x16xf32, #tpu.memory_space<vmem>>, vector<128x16xf32>
    %c0_1 = arith.constant 0 : index
    %c0_2 = arith.constant 0 : index
    %1 = vector.load %arg3[%c0_1, %c0_2] : memref<16x16xf32, #tpu.memory_space<vmem>>, vector<16x16xf32>
    %cst = arith.constant dense<0.000000e+00> : vector<128x16xf32>
    %2 = tpu.matmul %0, %1, %cst {dimension_numbers = #tpu.dot_dimension_numbers<[1], [0], [0], [1], [0, 0, 1, 1], [], []>} : vector<128x16xf32>, vector<16x16xf32>, vector<128x16xf32> -> vector<128x16xf32>
    %c0_3 = arith.constant 0 : index
    %c0_4 = arith.constant 0 : index
    %3 = vector.load %arg2[%c0_3, %c0_4] : memref<128x16xf32, #tpu.memory_space<vmem>>, vector<128x16xf32>
    %c0_5 = arith.constant 0 : index
    %c0_6 = arith.constant 0 : index
    %4 = vector.load %arg4[%c0_5, %c0_6] : memref<16x16xf32, #tpu.memory_space<vmem>>, vector<16x16xf32>
    %cst_7 = arith.constant dense<0.000000e+00> : vector<128x16xf32>
    %5 = tpu.matmul %3, %4, %cst_7 {dimension_numbers = #tpu.dot_dimension_numbers<[1], [0], [0], [1], [0, 0, 1, 1], [], []>} : vector<128x16xf32>, vector<16x16xf32>, vector<128x16xf32> -> vector<128x16xf32>
    %6 = arith.addf %2, %5 : vector<128x16xf32>
    %c0_8 = arith.constant 0 : index
    %c0_9 = arith.constant 0 : index
    %7 = vector.load %arg5[%c0_8, %c0_9] : memref<1x16xf32, #tpu.memory_space<vmem>>, vector<1x16xf32>
    %8 = vector.broadcast %7 : vector<1x16xf32> to vector<128x16xf32>
    %9 = arith.addf %6, %8 : vector<128x16xf32>
    %cst_10 = arith.constant 0.000000e+00 : f32
    %10 = vector.broadcast %cst_10 : f32 to vector<128x16xf32>
    %11 = arith.maximumf %9, %10 : vector<128x16xf32>
    %c0_11 = arith.constant 0 : index
    %c0_12 = arith.constant 0 : index
    %12 = vector.load %arg6[%c0_11, %c0_12] : memref<16x128xf32, #tpu.memory_space<vmem>>, vector<16x128xf32>
    %cst_13 = arith.constant dense<0.000000e+00> : vector<128x128xf32>
    %13 = tpu.matmul %11, %12, %cst_13 {dimension_numbers = #tpu.dot_dimension_numbers<[1], [0], [0], [1], [0, 0, 1, 1], [], []>} : vector<128x16xf32>, vector<16x128xf32>, vector<128x128xf32> -> vector<128x128xf32>
    %c0_14 = arith.constant 0 : index
    %c0_15 = arith.constant 0 : index
    %14 = vector.load %arg7[%c0_14, %c0_15] : memref<1x128xf32, #tpu.memory_space<vmem>>, vector<1x128xf32>
    %15 = vector.broadcast %14 : vector<1x128xf32> to vector<128x128xf32>
    %16 = arith.addf %13, %15 : vector<128x128xf32>
    %cst_16 = arith.constant dense<0xFF800000> : vector<128xf32>
    %17 = vector.multi_reduction <maximumf>, %16, %cst_16 [1] : vector<128x128xf32> to vector<128xf32>
    %18 = vector.shape_cast %17 : vector<128xf32> to vector<128x1xf32>
    %19 = vector.broadcast %18 : vector<128x1xf32> to vector<128x128xf32>
    %20 = arith.subf %16, %19 : vector<128x128xf32>
    %21 = math.exp %20 : vector<128x128xf32>
    %cst_17 = arith.constant dense<0.000000e+00> : vector<128xf32>
    %22 = vector.multi_reduction <add>, %21, %cst_17 [1] : vector<128x128xf32> to vector<128xf32>
    %23 = vector.shape_cast %22 : vector<128xf32> to vector<128x1xf32>
    %24 = math.log %23 : vector<128x1xf32>
    %25 = vector.broadcast %24 : vector<128x1xf32> to vector<128x128xf32>
    %26 = arith.subf %20, %25 : vector<128x128xf32>
    %c0_18 = arith.constant 0 : index
    %c0_19 = arith.constant 0 : index
    %27 = vector.load %arg8[%c0_18, %c0_19] : memref<128x128xf32, #tpu.memory_space<vmem>>, vector<128x128xf32>
    tpu.vector_store %arg8[%c0_18, %c0_19], %26 {strides = array<i32>} : memref<128x128xf32, #tpu.memory_space<vmem>>, vector<128x128xf32>,
    return
  }
  func.func @transform_0(%arg0: i32) -> (i32, i32) {
    %c0_i32 = arith.constant 0 : i32
    %c0_i32_0 = arith.constant 0 : i32
    return %arg0, %c0_i32 : i32, i32
  }
  func.func @transform_1(%arg0: i32) -> (i32, i32) {
    %c0_i32 = arith.constant 0 : i32
    %c0_i32_0 = arith.constant 0 : i32
    return %arg0, %c0_i32 : i32, i32
  }
  func.func @transform_2(%arg0: i32) -> (i32, i32) {
    %c0_i32 = arith.constant 0 : i32
    %c0_i32_0 = arith.constant 0 : i32
    %c0_i32_1 = arith.constant 0 : i32
    return %c0_i32, %c0_i32_0 : i32, i32
  }
  func.func @transform_3(%arg0: i32) -> (i32, i32) {
    %c0_i32 = arith.constant 0 : i32
    %c0_i32_0 = arith.constant 0 : i32
    %c0_i32_1 = arith.constant 0 : i32
    return %c0_i32, %c0_i32_0 : i32, i32
  }
  func.func @transform_4(%arg0: i32) -> (i32, i32) {
    %c0_i32 = arith.constant 0 : i32
    %c0_i32_0 = arith.constant 0 : i32
    %c0_i32_1 = arith.constant 0 : i32
    return %c0_i32, %c0_i32_0 : i32, i32
  }
  func.func @transform_5(%arg0: i32) -> (i32, i32) {
    %c0_i32 = arith.constant 0 : i32
    %c0_i32_0 = arith.constant 0 : i32
    %c0_i32_1 = arith.constant 0 : i32
    return %c0_i32, %c0_i32_0 : i32, i32
  }
  func.func @transform_6(%arg0: i32) -> (i32, i32) {
    %c0_i32 = arith.constant 0 : i32
    %c0_i32_0 = arith.constant 0 : i32
    %c0_i32_1 = arith.constant 0 : i32
    return %c0_i32, %c0_i32_0 : i32, i32
  }
  func.func @transform_7(%arg0: i32) -> (i32, i32) {
    %c0_i32 = arith.constant 0 : i32
    %c0_i32_0 = arith.constant 0 : i32
    return %arg0, %c0_i32 : i32, i32
  }
}

</mosaic_0001>

<llo_original>
// kernel: gin2_forward.4
$region0: #{gin2_forward.4}
  #allocation0 [shape = 'u32[]', space=smem, size = 0x4, offset = 0x4, fixed_abs, tag = 'smem constant byte address 0x4 - core index']
  #allocation1 [shape = 'u32[144,128]{1,0:T(1,128)}', space=vmem, size = 0x12000, scoped, tag = 'internal scratch']
  #allocation2 [shape = 'f32[128,16]{1,0:T(8,128)}', space=vmem, size = 0x10000, scoped, tag = 'scratch operand']
  %s0 = inlined_call_operand.vmem [shape: bf16[256,256], index: 0, kind: input, shape index: {}]
  %s1 = inlined_call_operand.vmem [shape: f32[256,16], index: 1, kind: input, shape index: {}, may-alias: {1,2}]
  %s2 = inlined_call_operand.vmem [shape: f32[256,16], index: 2, kind: input, shape index: {}, may-alias: {1,2}]
  %s3 = inlined_call_operand.vmem [shape: f32[16,16], index: 3, kind: input, shape index: {}]
  %s4 = inlined_call_operand.vmem [shape: f32[1,16], index: 4, kind: input, shape index: {}]
  %s5 = inlined_call_operand.vmem [shape: f32[256,16], index: 5, kind: output, shape index: {}]
  %s6 = sld [smem:[#allocation0]]
  $region61: #{gin2_forward.4} parent=0
    _
  %s8 = ssub.s32 1, %s6
  %s9 = scalar_select 0, %s8, %s6
  loop: start=0, step=1, limit=4
  $region2: #{gin2_forward.4} parent=0 // loop_pre_header
    _
  $region3: #{gin2_forward.4} parent=0 // loop_header
    %s11 = sphi 0, %s15
    %p12 = scmp.ge.s32.totalorder %s11, 4
    %s18 = sphi 0, %s30
    %s19 = sphi 0, %s26
    %s20 = sphi 0, %s18
    %s21 = sphi 0, %s19
    %s22 = sphi 0, %s20
    %s23 = sphi 0, %s21
    %s35 = sphi 0, %s37
    %s38 = sphi 0, %s35
    %s39 = sphi 0, %s38
    %s55 = sphi 0, %s39
    %s61 = sphi 0, %s63
    %s64 = sphi 0, %s61
    %s65 = sphi 0, %s64
    %s81 = sphi 0, %s65
    %s87 = sphi 0, %s89
    %s90 = sphi 0, %s87
    %s91 = sphi 0, %s90
    %s107 = sphi 0, %s91
    %s111 = sphi 0, %s111
    %s113 = sphi 0, %s111
    %s114 = sphi 0, %s113
    %s128 = sphi 0, %s114
    %s132 = sphi 0, %s132
    %s134 = sphi 0, %s132
    %s135 = sphi 0, %s134
    %s149 = sphi 0, %s135
    %s155 = sphi 0, %s157
    %s158 = sphi 0, %s155
    %s159 = sphi 0, %s158
    %s175 = sphi 0, %s159
  $region4: #{gin2_forward.4} parent=0 // loop_header_branch
    %14 = sbr.rel (%p12) target = $region8
  $region5: #{gin2_forward.4} parent=0 // loop_body
    %s16 = ssub.s32 %s11, 1
    %s17 = ssub.s32 %s11, 2
    %s24 = sadd.s32 1, %s19
    %p25 = scmp.ge.s32.totalorder %s24, 1
    %s26 = scalar_select %p25, 0, %s24
    %s27 = sadd.s32 1, %s18
    %s28 = scalar_select %p25, %s27, %s18
    %p29 = scmp.ge.s32.totalorder %s28, 2
    %s30 = scalar_select %p29, 0, %s28
    %s31 = ssub.s32 %s18, %s30
    %s32 = ssub.s32 %s19, %s26
    %s33 = sor.u32 %s31, %s32
    %p34 = scmp.eq.s32.totalorder %s33, 0
    %s36 = sadd.s32 %s35, 1
    %s37 = scalar_select %p34, %s35, %s36
    %p40 = pneg %p34
    %p41 = scmp.eq.s32.totalorder %s11, 1
    %p42 = por %p40, %p41
    %p43 = scmp.ne.s32.totalorder %s35, %s38
    %p44 = scmp.eq.s32.totalorder %s11, 0
    %p45 = por %p43, %p44
    %p46 = scmp.ne.s32.totalorder %s35, %s38
    %p47 = scmp.eq.s32.totalorder %s16, 1
    %p48 = por %p46, %p47
    %p49 = scmp.ne.s32.totalorder %s38, %s39
    %p50 = scmp.eq.s32.totalorder %s16, 0
    %p51 = por %p49, %p50
    %p52 = scmp.ne.s32.totalorder %s38, %s39
    %p53 = scmp.eq.s32.totalorder %s17, 1
    %p54 = por %p52, %p53
    %p56 = scmp.ne.s32.totalorder %s39, %s55
    %p57 = scmp.eq.s32.totalorder %s17, 0
    %p58 = por %p56, %p57
    %s59 = ssub.s32 %s19, %s26
    %p60 = scmp.eq.s32.totalorder %s59, 0
    %s62 = sadd.s32 %s61, 1
    %s63 = scalar_select %p60, %s61, %s62
    %p66 = pneg %p60
    %p67 = scmp.eq.s32.totalorder %s11, 1
    %p68 = por %p66, %p67
    %p69 = scmp.ne.s32.totalorder %s61, %s64
    %p70 = scmp.eq.s32.totalorder %s11, 0
    %p71 = por %p69, %p70
    %p72 = scmp.ne.s32.totalorder %s61, %s64
    %p73 = scmp.eq.s32.totalorder %s16, 1
    %p74 = por %p72, %p73
    %p75 = scmp.ne.s32.totalorder %s64, %s65
    %p76 = scmp.eq.s32.totalorder %s16, 0
    %p77 = por %p75, %p76
    %p78 = scmp.ne.s32.totalorder %s64, %s65
    %p79 = scmp.eq.s32.totalorder %s17, 1
    %p80 = por %p78, %p79
    %p82 = scmp.ne.s32.totalorder %s65, %s81
    %p83 = scmp.eq.s32.totalorder %s17, 0
    %p84 = por %p82, %p83
    %s85 = ssub.s32 %s18, %s30
    %p86 = scmp.eq.s32.totalorder %s85, 0
    %s88 = sadd.s32 %s87, 1
    %s89 = scalar_select %p86, %s87, %s88
    %p92 = pneg %p86
    %p93 = scmp.eq.s32.totalorder %s11, 1
    %p94 = por %p92, %p93
    %p95 = scmp.ne.s32.totalorder %s87, %s90
    %p96 = scmp.eq.s32.totalorder %s11, 0
    %p97 = por %p95, %p96
    %p98 = scmp.ne.s32.totalorder %s87, %s90
    %p99 = scmp.eq.s32.totalorder %s16, 1
    %p100 = por %p98, %p99
    %p101 = scmp.ne.s32.totalorder %s90, %s91
    %p102 = scmp.eq.s32.totalorder %s16, 0
    %p103 = por %p101, %p102
    %p104 = scmp.ne.s32.totalorder %s90, %s91
    %p105 = scmp.eq.s32.totalorder %s17, 1
    %p106 = por %p104, %p105
    %p108 = scmp.ne.s32.totalorder %s91, %s107
    %p109 = scmp.eq.s32.totalorder %s17, 0
    %p110 = por %p108, %p109
    %s112 = sadd.s32 %s111, 1
    %p115 = scmp.eq.s32.totalorder %s11, 1
    %p116 = scmp.ne.s32.totalorder %s111, %s113
    %p117 = scmp.eq.s32.totalorder %s11, 0
    %p118 = por %p116, %p117
    %p119 = scmp.ne.s32.totalorder %s111, %s113
    %p120 = scmp.eq.s32.totalorder %s16, 1
    %p121 = por %p119, %p120
    %p122 = scmp.ne.s32.totalorder %s113, %s114
    %p123 = scmp.eq.s32.totalorder %s16, 0
    %p124 = por %p122, %p123
    %p125 = scmp.ne.s32.totalorder %s113, %s114
    %p126 = scmp.eq.s32.totalorder %s17, 1
    %p127 = por %p125, %p126
    %p129 = scmp.ne.s32.totalorder %s114, %s128
    %p130 = scmp.eq.s32.totalorder %s17, 0
    %p131 = por %p129, %p130
    %s133 = sadd.s32 %s132, 1
    %p136 = scmp.eq.s32.totalorder %s11, 1
    %p137 = scmp.ne.s32.totalorder %s132, %s134
    %p138 = scmp.eq.s32.totalorder %s11, 0
    %p139 = por %p137, %p138
    %p140 = scmp.ne.s32.totalorder %s132, %s134
    %p141 = scmp.eq.s32.totalorder %s16, 1
    %p142 = por %p140, %p141
    %p143 = scmp.ne.s32.totalorder %s134, %s135
    %p144 = scmp.eq.s32.totalorder %s16, 0
    %p145 = por %p143, %p144
    %p146 = scmp.ne.s32.totalorder %s134, %s135
    %p147 = scmp.eq.s32.totalorder %s17, 1
    %p148 = por %p146, %p147
    %p150 = scmp.ne.s32.totalorder %s135, %s149
    %p151 = scmp.eq.s32.totalorder %s17, 0
    %p152 = por %p150, %p151
    %s153 = ssub.s32 %s18, %s30
    %p154 = scmp.eq.s32.totalorder %s153, 0
    %s156 = sadd.s32 %s155, 1
    %s157 = scalar_select %p154, %s155, %s156
    %p160 = pneg %p154
    %p161 = scmp.eq.s32.totalorder %s11, 1
    %p162 = por %p160, %p161
    %p163 = scmp.ne.s32.totalorder %s155, %s158
    %p164 = scmp.eq.s32.totalorder %s11, 0
    %p165 = por %p163, %p164
    %p166 = scmp.ne.s32.totalorder %s155, %s158
    %p167 = scmp.eq.s32.totalorder %s16, 1
    %p168 = por %p166, %p167
    %p169 = scmp.ne.s32.totalorder %s158, %s159
    %p170 = scmp.eq.s32.totalorder %s16, 0
    %p171 = por %p169, %p170
    %p172 = scmp.ne.s32.totalorder %s158, %s159
    %p173 = scmp.eq.s32.totalorder %s17, 1
    %p174 = por %p172, %p173
    %p176 = scmp.ne.s32.totalorder %s159, %s175
    %p177 = scmp.eq.s32.totalorder %s17, 0
    %p178 = por %p176, %p177
    %p179 = scmp.le.s32.totalorder 1, %s11
    %p180 = scmp.lt.s32.totalorder %s11, 3
    %p181 = pnand %p179, %p180
    %p182 = pneg %p181
    // Predicated region
    $region9: #{gin2_forward.4} parent=5 // pred_check
      _
    $region10: #{gin2_forward.4} parent=5 // pred_check_branch
      %184 = sbr.rel (%p181) target = $region12
    $region11: #{gin2_forward.4} parent=5 // pred_region
      %s185 = ssub.s32 %s11, 1
      // Predicated region
      $region13: #{gin2_forward.4} parent=11 // pred_check
        %p186 = pneg %p77
      $region14: #{gin2_forward.4} parent=11 // pred_check_branch
        %188 = sbr.rel (%p186) target = $region16
      $region15: #{gin2_forward.4} parent=11 // pred_region
        %s189 = smul.u32 32, %s21
        %p190 = scmp.lt.s32.totalorder %s189, 31
        %s191 = scalar_select %p190, %s189, 31
        %s192 = smul.addr %s191, 8
        %s193 = scalar_lea.vmem %s1, %s192
        %s194 = smul.u32 32, %s21
      $region16: #{gin2_forward.4} parent=11 // pred_fallthru
        _
      // Predicated region
      $region17: #{gin2_forward.4} parent=11 // pred_check
        %p195 = pneg %p124
      $region18: #{gin2_forward.4} parent=11 // pred_check_branch
        %197 = sbr.rel (%p195) target = $region20
      $region19: #{gin2_forward.4} parent=11 // pred_region
        _
      $region20: #{gin2_forward.4} parent=11 // pred_fallthru
        _
      // Predicated region
      $region21: #{gin2_forward.4} parent=11 // pred_check
        %p198 = pneg %p145
      $region22: #{gin2_forward.4} parent=11 // pred_check_branch
        %200 = sbr.rel (%p198) target = $region24
      $region23: #{gin2_forward.4} parent=11 // pred_region
        _
      $region24: #{gin2_forward.4} parent=11 // pred_fallthru
        _
    $region12: #{gin2_forward.4} parent=5 // pred_fallthru
      _
    %p201 = scmp.lt.s32.totalorder %s11, 2
    // Predicated region
    $region25: #{gin2_forward.4} parent=5 // pred_check
      %p202 = pneg %p201
    $region26: #{gin2_forward.4} parent=5 // pred_check_branch
      %204 = sbr.rel (%p202) target = $region28
    $region27: #{gin2_forward.4} parent=5 // pred_region
      // Predicated region
      $region29: #{gin2_forward.4} parent=27 // pred_check
        %p205 = pneg %p45
      $region30: #{gin2_forward.4} parent=27 // pred_check_branch
        %207 = sbr.rel (%p205) target = $region32
      $region31: #{gin2_forward.4} parent=27 // pred_region
        %s208 = smul.u32 16, %s18
        %s209 = smul.u32 2, %s19
        %p210 = scmp.lt.s32.totalorder %s208, 31
        %s211 = scalar_select %p210, %s208, 31
        %p212 = scmp.lt.s32.totalorder %s209, 1
        %s213 = scalar_select %p212, %s209, 1
        %s214 = smul.addr %s211, 2
        %s215 = sadd.s32 %s213, %s214
        %s216 = smul.addr %s215, 4
        %s217 = scalar_lea.vmem %s0, %s216
        %s218 = smul.u32 16, %s18
        %s219 = smul.u32 2, %s19
      $region32: #{gin2_forward.4} parent=27 // pred_fallthru
        _
      // Predicated region
      $region33: #{gin2_forward.4} parent=27 // pred_check
        %p220 = pneg %p97
      $region34: #{gin2_forward.4} parent=27 // pred_check_branch
        %222 = sbr.rel (%p220) target = $region36
      $region35: #{gin2_forward.4} parent=27 // pred_region
        %s223 = smul.u32 16, %s18
        %p224 = scmp.lt.s32.totalorder %s223, 31
        %s225 = scalar_select %p224, %s223, 31
        %s226 = smul.addr %s225, 8
        %s227 = scalar_lea.vmem %s2, %s226
        %s228 = smul.u32 16, %s18
      $region36: #{gin2_forward.4} parent=27 // pred_fallthru
        _
    $region28: #{gin2_forward.4} parent=5 // pred_fallthru
      _
    %p229 = scmp.le.s32.totalorder 1, %s11
    %p230 = scmp.lt.s32.totalorder %s11, 3
    %p231 = pnand %p229, %p230
    %p232 = pneg %p231
    // Predicated region
    $region37: #{gin2_forward.4} parent=5 // pred_check
      _
    $region38: #{gin2_forward.4} parent=5 // pred_check_branch
      %234 = sbr.rel (%p231) target = $region40
    $region39: #{gin2_forward.4} parent=5 // pred_region
      %s235 = ssub.s32 %s11, 1
      %s236 = smul.u32 16, %s20
      %s237 = smul.u32 2, %s21
      %p238 = scmp.lt.s32.totalorder %s236, 31
      %s239 = scalar_select %p238, %s236, 31
      %p240 = scmp.lt.s32.totalorder %s237, 1
      %s241 = scalar_select %p240, %s237, 1
      %s242 = smul.addr %s239, 2
      %s243 = sadd.s32 %s241, %s242
      %s244 = smul.addr %s243, 4
      %s245 = scalar_lea.vmem %s0, %s244
      %p246 = pneg %p51
      %p247 = pneg %p48
      %s248 = smul.u32 32, %s21
      %p249 = scmp.lt.s32.totalorder %s248, 31
      %s250 = scalar_select %p249, %s248, 31
      %s251 = smul.addr %s250, 8
      %s252 = scalar_lea.vmem %s1, %s251
      %p253 = pneg %p77
      %p254 = pneg %p74
      %s255 = smul.u32 16, %s20
      %p256 = scmp.lt.s32.totalorder %s255, 31
      %s257 = scalar_select %p256, %s255, 31
      %s258 = smul.addr %s257, 8
      %s259 = scalar_lea.vmem %s2, %s258
      %p260 = pneg %p103
      %p261 = pneg %p100
      %p262 = pneg %p124
      %p263 = pneg %p121
      %p264 = pneg %p145
      %p265 = pneg %p142
      %p266 = pneg %p171
      %p267 = pneg %p168
      %s268 = smul.u32 16, %s20
      %p269 = scmp.lt.s32.totalorder %s268, 31
      %s270 = scalar_select %p269, %s268, 31
      %s271 = smul.addr %s270, 8
      %s272 = scalar_lea.vmem %s5, %s271
      %s273 = smul.u32 16, %s20
      %s274 = smul.u32 2, %s21
      %p275 = scmp.lt.s32.totalorder %s273, 31
      %s276 = scalar_select %p275, %s273, 31
      %p277 = scmp.lt.s32.totalorder %s274, 1
      %s278 = scalar_select %p277, %s274, 1
      %s279 = smul.addr %s276, 2
      %s280 = sadd.s32 %s278, %s279
      %s281 = smul.addr %s280, 4
      %s282 = scalar_lea.vmem %s0, %s281
      %s283 = smul.u32 16, %s20
      %s284 = smul.u32 2, %s21
      %s285 = smul.u32 32, %s21
      %p286 = scmp.lt.s32.totalorder %s285, 31
      %s287 = scalar_select %p286, %s285, 31
      %s288 = smul.addr %s287, 8
      %s289 = scalar_lea.vmem %s1, %s288
      %s290 = smul.u32 32, %s21
      %s291 = smul.u32 16, %s20
      %p292 = scmp.lt.s32.totalorder %s291, 31
      %s293 = scalar_select %p292, %s291, 31
      %s294 = smul.addr %s293, 8
      %s295 = scalar_lea.vmem %s2, %s294
      %s296 = smul.u32 16, %s20
      %s297 = smul.u32 16, %s20
      %p298 = scmp.lt.s32.totalorder %s297, 31
      %s299 = scalar_select %p298, %s297, 31
      %s300 = smul.addr %s299, 8
      %s301 = scalar_lea.vmem %s5, %s300
      %s302 = smul.u32 16, %s20
      %p304 = scmp.eq.s32.totalorder %s21, 0
      // Predicated region
      $region41: #{gin2_forward.4} parent=39 // pred_check
        %p305 = pneg %p304
      $region42: #{gin2_forward.4} parent=39 // pred_check_branch
        %307 = sbr.rel (%p305) target = $region44
      $region43: #{gin2_forward.4} parent=39 // pred_region
        %vm308 = vcmask 130048
        %309 = vst.msk [vmem:[#allocation2] sm:$0xff] %vm308, 0.0
        %310 = vst.msk [vmem:[#allocation2 + $0x8] sm:$0xff] %vm308, 0.0
        %311 = vst.msk [vmem:[#allocation2 + $0x10] sm:$0xff] %vm308, 0.0
        %312 = vst.msk [vmem:[#allocation2 + $0x18] sm:$0xff] %vm308, 0.0
        %313 = vst.msk [vmem:[#allocation2 + $0x20] sm:$0xff] %vm308, 0.0
        %314 = vst.msk [vmem:[#allocation2 + $0x28] sm:$0xff] %vm308, 0.0
        %315 = vst.msk [vmem:[#allocation2 + $0x30] sm:$0xff] %vm308, 0.0
        %316 = vst.msk [vmem:[#allocation2 + $0x38] sm:$0xff] %vm308, 0.0
        %317 = vst.msk [vmem:[#allocation2 + $0x40] sm:$0xff] %vm308, 0.0
        %318 = vst.msk [vmem:[#allocation2 + $0x48] sm:$0xff] %vm308, 0.0
        %319 = vst.msk [vmem:[#allocation2 + $0x50] sm:$0xff] %vm308, 0.0
        %320 = vst.msk [vmem:[#allocation2 + $0x58] sm:$0xff] %vm308, 0.0
        %321 = vst.msk [vmem:[#allocation2 + $0x60] sm:$0xff] %vm308, 0.0
        %322 = vst.msk [vmem:[#allocation2 + $0x68] sm:$0xff] %vm308, 0.0
        %323 = vst.msk [vmem:[#allocation2 + $0x70] sm:$0xff] %vm308, 0.0
        %324 = vst.msk [vmem:[#allocation2 + $0x78] sm:$0xff] %vm308, 0.0
      $region44: #{gin2_forward.4} parent=39 // pred_fallthru
        _
      %v325 = vld [vmem:[#allocation2] sm:$0xff]
      %v326 = vld [vmem:[#allocation2 + $0x8] sm:$0xff]
      %v327 = vld [vmem:[#allocation2 + $0x10] sm:$0xff]
      %v328 = vld [vmem:[#allocation2 + $0x18] sm:$0xff]
      %v329 = vld [vmem:[#allocation2 + $0x20] sm:$0xff]
      %v330 = vld [vmem:[#allocation2 + $0x28] sm:$0xff]
      %v331 = vld [vmem:[#allocation2 + $0x30] sm:$0xff]
      %v332 = vld [vmem:[#allocation2 + $0x38] sm:$0xff]
      %v333 = vld [vmem:[#allocation2 + $0x40] sm:$0xff]
      %v334 = vld [vmem:[#allocation2 + $0x48] sm:$0xff]
      %v335 = vld [vmem:[#allocation2 + $0x50] sm:$0xff]
      %v336 = vld [vmem:[#allocation2 + $0x58] sm:$0xff]
      %v337 = vld [vmem:[#allocation2 + $0x60] sm:$0xff]
      %v338 = vld [vmem:[#allocation2 + $0x68] sm:$0xff]
      %v339 = vld [vmem:[#allocation2 + $0x70] sm:$0xff]
      %v340 = vld [vmem:[#allocation2 + $0x78] sm:$0xff]
      %v341 = vld [vmem:[%s282] sm:$0xff]
      %v342 = vld [vmem:[%s282 + $0x8] sm:$0xff]
      %v343 = vld [vmem:[%s282 + $0x10] sm:$0xff]
      %v344 = vld [vmem:[%s282 + $0x18] sm:$0xff]
      %v345 = vld [vmem:[%s282 + $0x20] sm:$0xff]
      %v346 = vld [vmem:[%s282 + $0x28] sm:$0xff]
      %v347 = vld [vmem:[%s282 + $0x30] sm:$0xff]
      %v348 = vld [vmem:[%s282 + $0x38] sm:$0xff]
      %v349 = vld [vmem:[%s282 + $0x40] sm:$0xff]
      %v350 = vld [vmem:[%s282 + $0x48] sm:$0xff]
      %v351 = vld [vmem:[%s282 + $0x50] sm:$0xff]
      %v352 = vld [vmem:[%s282 + $0x58] sm:$0xff]
      %v353 = vld [vmem:[%s282 + $0x60] sm:$0xff]
      %v354 = vld [vmem:[%s282 + $0x68] sm:$0xff]
      %v355 = vld [vmem:[%s282 + $0x70] sm:$0xff]
      %v356 = vld [vmem:[%s282 + $0x78] sm:$0xff]
      %v357 = vld [vmem:[%s289] sm:$0xff]
      %v358 = vld [vmem:[%s289 + $0x8] sm:$0xff]
      %v359 = vld [vmem:[%s289 + $0x10] sm:$0xff]
      %v360 = vld [vmem:[%s289 + $0x18] sm:$0xff]
      %v361 = vld [vmem:[%s289 + $0x20] sm:$0xff]
      %v362 = vld [vmem:[%s289 + $0x28] sm:$0xff]
      %v363 = vld [vmem:[%s289 + $0x30] sm:$0xff]
      %v364 = vld [vmem:[%s289 + $0x38] sm:$0xff]
      %v365 = vld [vmem:[%s289 + $0x40] sm:$0xff]
      %v366 = vld [vmem:[%s289 + $0x48] sm:$0xff]
      %v367 = vld [vmem:[%s289 + $0x50] sm:$0xff]
      %v368 = vld [vmem:[%s289 + $0x58] sm:$0xff]
      %v369 = vld [vmem:[%s289 + $0x60] sm:$0xff]
      %v370 = vld [vmem:[%s289 + $0x68] sm:$0xff]
      %v371 = vld [vmem:[%s289 + $0x70] sm:$0xff]
      %v372 = vld [vmem:[%s289 + $0x78] sm:$0xff]
      %v373 = vld [vmem:[%s289 + $0x80] sm:$0xff]
      %v374 = vld [vmem:[%s289 + $0x88] sm:$0xff]
      %v375 = vld [vmem:[%s289 + $0x90] sm:$0xff]
      %v376 = vld [vmem:[%s289 + $0x98] sm:$0xff]
      %v377 = vld [vmem:[%s289 + $0xa0] sm:$0xff]
      %v378 = vld [vmem:[%s289 + $0xa8] sm:$0xff]
      %v379 = vld [vmem:[%s289 + $0xb0] sm:$0xff]
      %v380 = vld [vmem:[%s289 + $0xb8] sm:$0xff]
      %v381 = vld [vmem:[%s289 + $0xc0] sm:$0xff]
      %v382 = vld [vmem:[%s289 + $0xc8] sm:$0xff]
      %v383 = vld [vmem:[%s289 + $0xd0] sm:$0xff]
      %v384 = vld [vmem:[%s289 + $0xd8] sm:$0xff]
      %v385 = vld [vmem:[%s289 + $0xe0] sm:$0xff]
      %v386 = vld [vmem:[%s289 + $0xe8] sm:$0xff]
      %v387 = vld [vmem:[%s289 + $0xf0] sm:$0xff]
      %v388 = vld [vmem:[%s289 + $0xf8] sm:$0xff]
      %v389 = vpack.c.bf16 %v358, %v357
      %v390 = vpack.c.bf16 %v360, %v359
      %v391 = vpack.c.bf16 %v362, %v361
      %v392 = vpack.c.bf16 %v364, %v363
      %v393 = vpack.c.bf16 %v366, %v365
      %v394 = vpack.c.bf16 %v368, %v367
      %v395 = vpack.c.bf16 %v370, %v369
      %v396 = vpack.c.bf16 %v372, %v371
      %v397 = vpack.c.bf16 %v374, %v373
      %v398 = vpack.c.bf16 %v376, %v375
      %v399 = vpack.c.bf16 %v378, %v377
      %v400 = vpack.c.bf16 %v380, %v379
      %v401 = vpack.c.bf16 %v382, %v381
      %v402 = vpack.c.bf16 %v384, %v383
      %v403 = vpack.c.bf16 %v386, %v385
      %v404 = vpack.c.bf16 %v388, %v387
      %v421 = vunpack.c.l.b16 %v341
      %v422 = vunpack.c.h.b16 %v341
      %v423 = vunpack.c.l.b16 %v342
      %v424 = vunpack.c.h.b16 %v342
      %v425 = vunpack.c.l.b16 %v343
      %v426 = vunpack.c.h.b16 %v343
      %v427 = vunpack.c.l.b16 %v344
      %v428 = vunpack.c.h.b16 %v344
      %v429 = vunpack.c.l.b16 %v345
      %v430 = vunpack.c.h.b16 %v345
      %v431 = vunpack.c.l.b16 %v346
      %v432 = vunpack.c.h.b16 %v346
      %v433 = vunpack.c.l.b16 %v347
      %v434 = vunpack.c.h.b16 %v347
      %v435 = vunpack.c.l.b16 %v348
      %v436 = vunpack.c.h.b16 %v348
      %v437 = vunpack.c.l.b16 %v349
      %v438 = vunpack.c.h.b16 %v349
      %v439 = vunpack.c.l.b16 %v350
      %v440 = vunpack.c.h.b16 %v350
      %v441 = vunpack.c.l.b16 %v351
      %v442 = vunpack.c.h.b16 %v351
      %v443 = vunpack.c.l.b16 %v352
      %v444 = vunpack.c.h.b16 %v352
      %v445 = vunpack.c.l.b16 %v353
      %v446 = vunpack.c.h.b16 %v353
      %v447 = vunpack.c.l.b16 %v354
      %v448 = vunpack.c.h.b16 %v354
      %v449 = vunpack.c.l.b16 %v355
      %v450 = vunpack.c.h.b16 %v355
      %v451 = vunpack.c.l.b16 %v356
      %v452 = vunpack.c.h.b16 %v356
      %v453 = vpack.c.b16 %v423, %v421
      %v454 = vpack.c.b16 %v424, %v422
      %v455 = vpack.c.b16 %v427, %v425
      %v456 = vpack.c.b16 %v428, %v426
      %v457 = vpack.c.b16 %v431, %v429
      %v458 = vpack.c.b16 %v432, %v430
      %v459 = vpack.c.b16 %v435, %v433
      %v460 = vpack.c.b16 %v436, %v434
      %v461 = vpack.c.b16 %v439, %v437
      %v462 = vpack.c.b16 %v440, %v438
      %v463 = vpack.c.b16 %v443, %v441
      %v464 = vpack.c.b16 %v444, %v442
      %v465 = vpack.c.b16 %v447, %v445
      %v466 = vpack.c.b16 %v448, %v446
      %v467 = vpack.c.b16 %v451, %v449
      %v468 = vpack.c.b16 %v452, %v450
      %485 = vmatprep.subr.bf16.mxu0 0
      %486 = vmatpush1.bf16.msra.mxu0 %v389
      %487 = vmatprep.subr.bf16.mxu0 0
      %488 = vmatpush1.bf16.msra.mxu0 %v390
      %489 = vmatprep.subr.bf16.mxu0 0
      %490 = vmatpush1.bf16.msra.mxu0 %v391
      %491 = vmatprep.subr.bf16.mxu0 0
      %492 = vmatpush1.bf16.msra.mxu0 %v392
      %493 = vmatprep.subr.bf16.mxu0 0
      %494 = vmatpush1.bf16.msra.mxu0 %v393
      %495 = vmatprep.subr.bf16.mxu0 0
      %496 = vmatpush1.bf16.msra.mxu0 %v394
      %497 = vmatprep.subr.bf16.mxu0 0
      %498 = vmatpush1.bf16.msra.mxu0 %v395
      %499 = vmatprep.subr.bf16.mxu0 0
      %500 = vmatpush1.bf16.msra.mxu0 %v396
      %501 = vmatprep.subr.bf16.mxu0 0
      %502 = vmatpush1.bf16.msra.mxu0 %v397
      %503 = vmatprep.subr.bf16.mxu0 0
      %504 = vmatpush1.bf16.msra.mxu0 %v398
      %505 = vmatprep.subr.bf16.mxu0 0
      %506 = vmatpush1.bf16.msra.mxu0 %v399
      %507 = vmatprep.subr.bf16.mxu0 0
      %508 = vmatpush1.bf16.msra.mxu0 %v400
      %509 = vmatprep.subr.bf16.mxu0 0
      %510 = vmatpush1.bf16.msra.mxu0 %v401
      %511 = vmatprep.subr.bf16.mxu0 0
      %512 = vmatpush1.bf16.msra.mxu0 %v402
      %513 = vmatprep.subr.bf16.mxu0 0
      %514 = vmatpush1.bf16.msra.mxu0 %v403
      %515 = vmatprep.subr.bf16.mxu0 0
      %516 = vmatpush1.bf16.msra.mxu0 %v404
      %517 = vmatprep.mubr.bf16.mxu0 %v454
      %518 = vmatmul.mubr.bf16.gmra.mrb[0].mxu0 %v453
      %v519 = vpop.f32.mrb[0].mxu0
      %v520 = vadd.f32 0.0, %v519
      %v521 = vpop.f32.mrb[0].mxu0
      %v522 = vpop.f32.mrb[0].mxu0
      %v523 = vadd.f32 0.0, %v522
      %v524 = vpop.f32.mrb[0].mxu0
      %525 = vmatprep.mubr.bf16.mxu0 %v456
      %526 = vmatmul.mubr.bf16.gmra.mrb[0].mxu0 %v455
      %v527 = vpop.f32.mrb[0].mxu0
      %v528 = vadd.f32 0.0, %v527
      %v529 = vpop.f32.mrb[0].mxu0
      %v530 = vpop.f32.mrb[0].mxu0
      %v531 = vadd.f32 0.0, %v530
      %v532 = vpop.f32.mrb[0].mxu0
      %533 = vmatprep.mubr.bf16.mxu0 %v458
      %534 = vmatmul.mubr.bf16.gmra.mrb[0].mxu0 %v457
      %v535 = vpop.f32.mrb[0].mxu0
      %v536 = vadd.f32 0.0, %v535
      %v537 = vpop.f32.mrb[0].mxu0
      %v538 = vpop.f32.mrb[0].mxu0
      %v539 = vadd.f32 0.0, %v538
      %v540 = vpop.f32.mrb[0].mxu0
      %541 = vmatprep.mubr.bf16.mxu0 %v460
      %542 = vmatmul.mubr.bf16.gmra.mrb[0].mxu0 %v459
      %v543 = vpop.f32.mrb[0].mxu0
      %v544 = vadd.f32 0.0, %v543
      %v545 = vpop.f32.mrb[0].mxu0
      %v546 = vpop.f32.mrb[0].mxu0
      %v547 = vadd.f32 0.0, %v546
      %v548 = vpop.f32.mrb[0].mxu0
      %549 = vmatprep.mubr.bf16.mxu0 %v462
      %550 = vmatmul.mubr.bf16.gmra.mrb[0].mxu0 %v461
      %v551 = vpop.f32.mrb[0].mxu0
      %v552 = vadd.f32 0.0, %v551
      %v553 = vpop.f32.mrb[0].mxu0
      %v554 = vpop.f32.mrb[0].mxu0
      %v555 = vadd.f32 0.0, %v554
      %v556 = vpop.f32.mrb[0].mxu0
      %557 = vmatprep.mubr.bf16.mxu0 %v464
      %558 = vmatmul.mubr.bf16.gmra.mrb[0].mxu0 %v463
      %v559 = vpop.f32.mrb[0].mxu0
      %v560 = vadd.f32 0.0, %v559
      %v561 = vpop.f32.mrb[0].mxu0
      %v562 = vpop.f32.mrb[0].mxu0
      %v563 = vadd.f32 0.0, %v562
      %v564 = vpop.f32.mrb[0].mxu0
      %565 = vmatprep.mubr.bf16.mxu0 %v466
      %566 = vmatmul.mubr.bf16.gmra.mrb[0].mxu0 %v465
      %v567 = vpop.f32.mrb[0].mxu0
      %v568 = vadd.f32 0.0, %v567
      %v569 = vpop.f32.mrb[0].mxu0
      %v570 = vpop.f32.mrb[0].mxu0
      %v571 = vadd.f32 0.0, %v570
      %v572 = vpop.f32.mrb[0].mxu0
      %573 = vmatprep.mubr.bf16.mxu0 %v468
      %574 = vmatmul.mubr.bf16.gmra.mrb[0].mxu0 %v467
      %v575 = vpop.f32.mrb[0].mxu0
      %v576 = vadd.f32 0.0, %v575
      %v577 = vpop.f32.mrb[0].mxu0
      %v578 = vpop.f32.mrb[0].mxu0
      %v579 = vadd.f32 0.0, %v578
      %v580 = vpop.f32.mrb[0].mxu0
      %581 = vdwg.mxu0
      %v582 = vadd.f32 %v325, %v520
      %v583 = vadd.f32 %v326, %v523
      %v584 = vadd.f32 %v327, %v528
      %v585 = vadd.f32 %v328, %v531
      %v586 = vadd.f32 %v329, %v536
      %v587 = vadd.f32 %v330, %v539
      %v588 = vadd.f32 %v331, %v544
      %v589 = vadd.f32 %v332, %v547
      %v590 = vadd.f32 %v333, %v552
      %v591 = vadd.f32 %v334, %v555
      %v592 = vadd.f32 %v335, %v560
      %v593 = vadd.f32 %v336, %v563
      %v594 = vadd.f32 %v337, %v568
      %v595 = vadd.f32 %v338, %v571
      %v596 = vadd.f32 %v339, %v576
      %v597 = vadd.f32 %v340, %v579
      %vm598 = vcmask 130048
      %599 = vst.msk [vmem:[#allocation2] sm:$0xff] %vm598, %v582
      %600 = vst.msk [vmem:[#allocation2 + $0x8] sm:$0xff] %vm598, %v583
      %601 = vst.msk [vmem:[#allocation2 + $0x10] sm:$0xff] %vm598, %v584
      %602 = vst.msk [vmem:[#allocation2 + $0x18] sm:$0xff] %vm598, %v585
      %603 = vst.msk [vmem:[#allocation2 + $0x20] sm:$0xff] %vm598, %v586
      %604 = vst.msk [vmem:[#allocation2 + $0x28] sm:$0xff] %vm598, %v587
      %605 = vst.msk [vmem:[#allocation2 + $0x30] sm:$0xff] %vm598, %v588
      %606 = vst.msk [vmem:[#allocation2 + $0x38] sm:$0xff] %vm598, %v589
      %607 = vst.msk [vmem:[#allocation2 + $0x40] sm:$0xff] %vm598, %v590
      %608 = vst.msk [vmem:[#allocation2 + $0x48] sm:$0xff] %vm598, %v591
      %609 = vst.msk [vmem:[#allocation2 + $0x50] sm:$0xff] %vm598, %v592
      %610 = vst.msk [vmem:[#allocation2 + $0x58] sm:$0xff] %vm598, %v593
      %611 = vst.msk [vmem:[#allocation2 + $0x60] sm:$0xff] %vm598, %v594
      %612 = vst.msk [vmem:[#allocation2 + $0x68] sm:$0xff] %vm598, %v595
      %613 = vst.msk [vmem:[#allocation2 + $0x70] sm:$0xff] %vm598, %v596
      %614 = vst.msk [vmem:[#allocation2 + $0x78] sm:$0xff] %vm598, %v597
      // Predicated region
      $region45: #{gin2_forward.4} parent=39 // pred_check
        %p615 = pneg %p304
      $region46: #{gin2_forward.4} parent=39 // pred_check_branch
        %617 = sbr.rel (%p615) target = $region48
      $region47: #{gin2_forward.4} parent=39 // pred_region
        %v618 = vld [vmem:[%s295] sm:$0xff]
        %v619 = vld [vmem:[%s295 + $0x8] sm:$0xff]
        %v620 = vld [vmem:[%s295 + $0x10] sm:$0xff]
        %v621 = vld [vmem:[%s295 + $0x18] sm:$0xff]
        %v622 = vld [vmem:[%s295 + $0x20] sm:$0xff]
        %v623 = vld [vmem:[%s295 + $0x28] sm:$0xff]
        %v624 = vld [vmem:[%s295 + $0x30] sm:$0xff]
        %v625 = vld [vmem:[%s295 + $0x38] sm:$0xff]
        %v626 = vld [vmem:[%s295 + $0x40] sm:$0xff]
        %v627 = vld [vmem:[%s295 + $0x48] sm:$0xff]
        %v628 = vld [vmem:[%s295 + $0x50] sm:$0xff]
        %v629 = vld [vmem:[%s295 + $0x58] sm:$0xff]
        %v630 = vld [vmem:[%s295 + $0x60] sm:$0xff]
        %v631 = vld [vmem:[%s295 + $0x68] sm:$0xff]
        %v632 = vld [vmem:[%s295 + $0x70] sm:$0xff]
        %v633 = vld [vmem:[%s295 + $0x78] sm:$0xff]
        %v634 = vld [vmem:[#allocation2] sm:$0xff]
        %v635 = vld [vmem:[#allocation2 + $0x8] sm:$0xff]
        %v636 = vld [vmem:[#allocation2 + $0x10] sm:$0xff]
        %v637 = vld [vmem:[#allocation2 + $0x18] sm:$0xff]
        %v638 = vld [vmem:[#allocation2 + $0x20] sm:$0xff]
        %v639 = vld [vmem:[#allocation2 + $0x28] sm:$0xff]
        %v640 = vld [vmem:[#allocation2 + $0x30] sm:$0xff]
        %v641 = vld [vmem:[#allocation2 + $0x38] sm:$0xff]
        %v642 = vld [vmem:[#allocation2 + $0x40] sm:$0xff]
        %v643 = vld [vmem:[#allocation2 + $0x48] sm:$0xff]
        %v644 = vld [vmem:[#allocation2 + $0x50] sm:$0xff]
        %v645 = vld [vmem:[#allocation2 + $0x58] sm:$0xff]
        %v646 = vld [vmem:[#allocation2 + $0x60] sm:$0xff]
        %v647 = vld [vmem:[#allocation2 + $0x68] sm:$0xff]
        %v648 = vld [vmem:[#allocation2 + $0x70] sm:$0xff]
        %v649 = vld [vmem:[#allocation2 + $0x78] sm:$0xff]
        %v650 = vadd.f32 %v618, %v634
        %v651 = vadd.f32 %v619, %v635
        %v652 = vadd.f32 %v620, %v636
        %v653 = vadd.f32 %v621, %v637
        %v654 = vadd.f32 %v622, %v638
        %v655 = vadd.f32 %v623, %v639
        %v656 = vadd.f32 %v624, %v640
        %v657 = vadd.f32 %v625, %v641
        %v658 = vadd.f32 %v626, %v642
        %v659 = vadd.f32 %v627, %v643
        %v660 = vadd.f32 %v628, %v644
        %v661 = vadd.f32 %v629, %v645
        %v662 = vadd.f32 %v630, %v646
        %v663 = vadd.f32 %v631, %v647
        %v664 = vadd.f32 %v632, %v648
        %v665 = vadd.f32 %v633, %v649
        %v666 = vld [vmem:[%s3] sm:$0xff]
        %v667 = vld [vmem:[%s3 + $0x8] sm:$0xff]
        %v668 = vld [vmem:[%s4] sm:$0x1]
        %v670 = vlaneseq
        %v671 = vshrl.u32 %v670, 7
        %v672 = vsub.s32 0, %v671
        %v673 = vrot.slane %v668, %v672
        %v676 = vsel %vm598, %v650, 0
        %v679 = vsel %vm598, %v651, 0
        %v682 = vsel %vm598, %v652, 0
        %v685 = vsel %vm598, %v653, 0
        %v688 = vsel %vm598, %v654, 0
        %v691 = vsel %vm598, %v655, 0
        %v694 = vsel %vm598, %v656, 0
        %v697 = vsel %vm598, %v657, 0
        %v700 = vsel %vm598, %v658, 0
        %v703 = vsel %vm598, %v659, 0
        %v706 = vsel %vm598, %v660, 0
        %v709 = vsel %vm598, %v661, 0
        %v712 = vsel %vm598, %v662, 0
        %v715 = vsel %vm598, %v663, 0
        %v718 = vsel %vm598, %v664, 0
        %v721 = vsel %vm598, %v665, 0
        %723 = vmatprep.subr.mxu0 0.0
        %724 = vmatpush1.msra.mxu0 %v666
        %725 = vmatprep.subr.mxu0 0.0
        %726 = vmatpush1.msra.mxu0 %v667
        %727 = vmatprep.subr.mxu0 0.0
        %728 = vmatpush1.msra.mxu0 0.0
        %729 = vmatprep.subr.mxu0 0.0
        %730 = vmatpush1.msra.mxu0 0.0
        %731 = vmatprep.subr.mxu0 0.0
        %732 = vmatpush1.msra.mxu0 0.0
        %733 = vmatprep.subr.mxu0 0.0
        %734 = vmatpush1.msra.mxu0 0.0
        %735 = vmatprep.subr.mxu0 0.0
        %736 = vmatpush1.msra.mxu0 0.0
        %737 = vmatprep.subr.mxu0 0.0
        %738 = vmatpush1.msra.mxu0 0.0
        %739 = vmatprep.subr.mxu0 0.0
        %740 = vmatpush1.msra.mxu0 0.0
        %741 = vmatprep.subr.mxu0 0.0
        %742 = vmatpush1.msra.mxu0 0.0
        %743 = vmatprep.subr.mxu0 0.0
        %744 = vmatpush1.msra.mxu0 0.0
        %745 = vmatprep.subr.mxu0 0.0
        %746 = vmatpush1.msra.mxu0 0.0
        %747 = vmatprep.subr.mxu0 0.0
        %748 = vmatpush1.msra.mxu0 0.0
        %749 = vmatprep.subr.mxu0 0.0
        %750 = vmatpush1.msra.mxu0 0.0
        %751 = vmatprep.subr.mxu0 0.0
        %752 = vmatpush1.msra.mxu0 0.0
        %753 = vmatprep.subr.mxu0 0.0
        %754 = vmatpush1.msra.mxu0 0.0
        %755 = vmatprep.subr.mxu0 0.0
        %756 = vmatpush1.msra.mxu0 0.0
        %757 = vmatprep.subr.mxu0 0.0
        %758 = vmatpush1.msra.mxu0 0.0
        %759 = vmatprep.subr.mxu0 0.0
        %760 = vmatpush1.msra.mxu0 0.0
        %761 = vmatprep.subr.mxu0 0.0
        %762 = vmatpush1.msra.mxu0 0.0
        %763 = vmatprep.subr.mxu0 0.0
        %764 = vmatpush1.msra.mxu0 0.0
        %765 = vmatprep.subr.mxu0 0.0
        %766 = vmatpush1.msra.mxu0 0.0
        %767 = vmatprep.subr.mxu0 0.0
        %768 = vmatpush1.msra.mxu0 0.0
        %769 = vmatprep.subr.mxu0 0.0
        %770 = vmatpush1.msra.mxu0 0.0
        %771 = vmatprep.subr.mxu0 0.0
        %772 = vmatpush1.msra.mxu0 0.0
        %773 = vmatprep.subr.mxu0 0.0
        %774 = vmatpush1.msra.mxu0 0.0
        %775 = vmatprep.subr.mxu0 0.0
        %776 = vmatpush1.msra.mxu0 0.0
        %777 = vmatprep.subr.mxu0 0.0
        %778 = vmatpush1.msra.mxu0 0.0
        %779 = vmatprep.subr.mxu0 0.0
        %780 = vmatpush1.msra.mxu0 0.0
        %781 = vmatprep.subr.mxu0 0.0
        %782 = vmatpush1.msra.mxu0 0.0
        %783 = vmatprep.subr.mxu0 0.0
        %784 = vmatpush1.msra.mxu0 0.0
        %785 = vmatprep.subr.mxu0 0.0
        %786 = vmatpush1.msra.mxu0 0.0
        %787 = vmatprep.mubr.f32.mxu0 0.0
        %788 = vmatmul.mubr.f32.gmra.mrb[0].mxu0 %v676
        %v789 = vpop.f32.mrb[0].mxu0
        %v790 = vadd.f32 %v673, %v789
        %v791 = vpop.f32.mrb[0].mxu0
        %792 = vmatprep.mubr.f32.mxu0 0.0
        %793 = vmatmul.mubr.f32.gmra.mrb[0].mxu0 %v679
        %v794 = vpop.f32.mrb[0].mxu0
        %v795 = vadd.f32 %v673, %v794
        %v796 = vpop.f32.mrb[0].mxu0
        %797 = vmatprep.mubr.f32.mxu0 0.0
        %798 = vmatmul.mubr.f32.gmra.mrb[0].mxu0 %v682
        %v799 = vpop.f32.mrb[0].mxu0
        %v800 = vadd.f32 %v673, %v799
        %v801 = vpop.f32.mrb[0].mxu0
        %802 = vmatprep.mubr.f32.mxu0 0.0
        %803 = vmatmul.mubr.f32.gmra.mrb[0].mxu0 %v685
        %v804 = vpop.f32.mrb[0].mxu0
        %v805 = vadd.f32 %v673, %v804
        %v806 = vpop.f32.mrb[0].mxu0
        %807 = vmatprep.mubr.f32.mxu0 0.0
        %808 = vmatmul.mubr.f32.gmra.mrb[0].mxu0 %v688
        %v809 = vpop.f32.mrb[0].mxu0
        %v810 = vadd.f32 %v673, %v809
        %v811 = vpop.f32.mrb[0].mxu0
        %812 = vmatprep.mubr.f32.mxu0 0.0
        %813 = vmatmul.mubr.f32.gmra.mrb[0].mxu0 %v691
        %v814 = vpop.f32.mrb[0].mxu0
        %v815 = vadd.f32 %v673, %v814
        %v816 = vpop.f32.mrb[0].mxu0
        %817 = vmatprep.mubr.f32.mxu0 0.0
        %818 = vmatmul.mubr.f32.gmra.mrb[0].mxu0 %v694
        %v819 = vpop.f32.mrb[0].mxu0
        %v820 = vadd.f32 %v673, %v819
        %v821 = vpop.f32.mrb[0].mxu0
        %822 = vmatprep.mubr.f32.mxu0 0.0
        %823 = vmatmul.mubr.f32.gmra.mrb[0].mxu0 %v697
        %v824 = vpop.f32.mrb[0].mxu0
        %v825 = vadd.f32 %v673, %v824
        %v826 = vpop.f32.mrb[0].mxu0
        %827 = vmatprep.mubr.f32.mxu0 0.0
        %828 = vmatmul.mubr.f32.gmra.mrb[0].mxu0 %v700
        %v829 = vpop.f32.mrb[0].mxu0
        %v830 = vadd.f32 %v673, %v829
        %v831 = vpop.f32.mrb[0].mxu0
        %832 = vmatprep.mubr.f32.mxu0 0.0
        %833 = vmatmul.mubr.f32.gmra.mrb[0].mxu0 %v703
        %v834 = vpop.f32.mrb[0].mxu0
        %v835 = vadd.f32 %v673, %v834
        %v836 = vpop.f32.mrb[0].mxu0
        %837 = vmatprep.mubr.f32.mxu0 0.0
        %838 = vmatmul.mubr.f32.gmra.mrb[0].mxu0 %v706
        %v839 = vpop.f32.mrb[0].mxu0
        %v840 = vadd.f32 %v673, %v839
        %v841 = vpop.f32.mrb[0].mxu0
        %842 = vmatprep.mubr.f32.mxu0 0.0
        %843 = vmatmul.mubr.f32.gmra.mrb[0].mxu0 %v709
        %v844 = vpop.f32.mrb[0].mxu0
        %v845 = vadd.f32 %v673, %v844
        %v846 = vpop.f32.mrb[0].mxu0
        %847 = vmatprep.mubr.f32.mxu0 0.0
        %848 = vmatmul.mubr.f32.gmra.mrb[0].mxu0 %v712
        %v849 = vpop.f32.mrb[0].mxu0
        %v850 = vadd.f32 %v673, %v849
        %v851 = vpop.f32.mrb[0].mxu0
        %852 = vmatprep.mubr.f32.mxu0 0.0
        %853 = vmatmul.mubr.f32.gmra.mrb[0].mxu0 %v715
        %v854 = vpop.f32.mrb[0].mxu0
        %v855 = vadd.f32 %v673, %v854
        %v856 = vpop.f32.mrb[0].mxu0
        %857 = vmatprep.mubr.f32.mxu0 0.0
        %858 = vmatmul.mubr.f32.gmra.mrb[0].mxu0 %v718
        %v859 = vpop.f32.mrb[0].mxu0
        %v860 = vadd.f32 %v673, %v859
        %v861 = vpop.f32.mrb[0].mxu0
        %862 = vmatprep.mubr.f32.mxu0 0.0
        %863 = vmatmul.mubr.f32.gmra.mrb[0].mxu0 %v721
        %v864 = vpop.f32.mrb[0].mxu0
        %v865 = vadd.f32 %v673, %v864
        %v866 = vpop.f32.mrb[0].mxu0
        %867 = vdwg.mxu0
        %v868 = vmax.f32 %v790, 0.0
        %v869 = vmax.f32 %v795, 0.0
        %v870 = vmax.f32 %v800, 0.0
        %v871 = vmax.f32 %v805, 0.0
        %v872 = vmax.f32 %v810, 0.0
        %v873 = vmax.f32 %v815, 0.0
        %v874 = vmax.f32 %v820, 0.0
        %v875 = vmax.f32 %v825, 0.0
        %v876 = vmax.f32 %v830, 0.0
        %v877 = vmax.f32 %v835, 0.0
        %v878 = vmax.f32 %v840, 0.0
        %v879 = vmax.f32 %v845, 0.0
        %v880 = vmax.f32 %v850, 0.0
        %v881 = vmax.f32 %v855, 0.0
        %v882 = vmax.f32 %v860, 0.0
        %v883 = vmax.f32 %v865, 0.0
        %884 = vst.msk [vmem:[%s301] sm:$0xff] %vm598, %v868
        %885 = vst.msk [vmem:[%s301 + $0x8] sm:$0xff] %vm598, %v869
        %886 = vst.msk [vmem:[%s301 + $0x10] sm:$0xff] %vm598, %v870
        %887 = vst.msk [vmem:[%s301 + $0x18] sm:$0xff] %vm598, %v871
        %888 = vst.msk [vmem:[%s301 + $0x20] sm:$0xff] %vm598, %v872
        %889 = vst.msk [vmem:[%s301 + $0x28] sm:$0xff] %vm598, %v873
        %890 = vst.msk [vmem:[%s301 + $0x30] sm:$0xff] %vm598, %v874
        %891 = vst.msk [vmem:[%s301 + $0x38] sm:$0xff] %vm598, %v875
        %892 = vst.msk [vmem:[%s301 + $0x40] sm:$0xff] %vm598, %v876
        %893 = vst.msk [vmem:[%s301 + $0x48] sm:$0xff] %vm598, %v877
        %894 = vst.msk [vmem:[%s301 + $0x50] sm:$0xff] %vm598, %v878
        %895 = vst.msk [vmem:[%s301 + $0x58] sm:$0xff] %vm598, %v879
        %896 = vst.msk [vmem:[%s301 + $0x60] sm:$0xff] %vm598, %v880
        %897 = vst.msk [vmem:[%s301 + $0x68] sm:$0xff] %vm598, %v881
        %898 = vst.msk [vmem:[%s301 + $0x70] sm:$0xff] %vm598, %v882
        %899 = vst.msk [vmem:[%s301 + $0x78] sm:$0xff] %vm598, %v883
      $region48: #{gin2_forward.4} parent=39 // pred_fallthru
        _
      %s900 = smul.u32 16, %s20
      %p901 = scmp.lt.s32.totalorder %s900, 31
      %s902 = scalar_select %p901, %s900, 31
      %s903 = smul.addr %s902, 8
      %s904 = scalar_lea.vmem %s5, %s903
      // Predicated region
      $region49: #{gin2_forward.4} parent=39 // pred_check
        %p905 = pneg %p168
      $region50: #{gin2_forward.4} parent=39 // pred_check_branch
        %907 = sbr.rel (%p905) target = $region52
      $region51: #{gin2_forward.4} parent=39 // pred_region
        %s908 = smul.u32 16, %s20
      $region52: #{gin2_forward.4} parent=39 // pred_fallthru
        _
    $region40: #{gin2_forward.4} parent=5 // pred_fallthru
      _
    %p909 = scmp.le.s32.totalorder 2, %s11
    // Predicated region
    $region53: #{gin2_forward.4} parent=5 // pred_check
      %p910 = pneg %p909
    $region54: #{gin2_forward.4} parent=5 // pred_check_branch
      %912 = sbr.rel (%p910) target = $region56
    $region55: #{gin2_forward.4} parent=5 // pred_region
      %s913 = ssub.s32 %s11, 2
      // Predicated region
      $region57: #{gin2_forward.4} parent=55 // pred_check
        %p914 = pneg %p174
      $region58: #{gin2_forward.4} parent=55 // pred_check_branch
        %916 = sbr.rel (%p914) target = $region60
      $region59: #{gin2_forward.4} parent=55 // pred_region
        %s917 = smul.u32 16, %s22
        %p918 = scmp.lt.s32.totalorder %s917, 31
        %s919 = scalar_select %p918, %s917, 31
        %s920 = smul.addr %s919, 8
        %s921 = scalar_lea.vmem %s5, %s920
      $region60: #{gin2_forward.4} parent=55 // pred_fallthru
        _
    $region56: #{gin2_forward.4} parent=5 // pred_fallthru
      _
  $region6: #{gin2_forward.4} parent=0 // loop_footer
    %s15 = sadd.s32 1, %s11
  $region7: #{gin2_forward.4} parent=0 // loop_footer_branch
    %10 = sbr.rel target = $region3
  $region8: #{gin2_forward.4} parent=0 // loop_exit
    _

// kernel: gin2_forward.3
$region0: #{gin2_forward.3}
  #allocation0 [shape = 'u32[]', space=smem, size = 0x4, offset = 0x4, fixed_abs, tag = 'smem constant byte address 0x4 - core index']
  #allocation1 [shape = 'u32[144,128]{1,0:T(1,128)}', space=vmem, size = 0x12000, scoped, tag = 'internal scratch']
  #allocation2 [shape = 'f32[128,8]{1,0:T(8,128)}', space=vmem, size = 0x10000, scoped, tag = 'scratch operand']
  %s0 = inlined_call_operand.vmem [shape: bf16[256,256], index: 0, kind: input, shape index: {}]
  %s1 = inlined_call_operand.vmem [shape: f32[256,8], index: 1, kind: input, shape index: {}, may-alias: {1,2}]
  %s2 = inlined_call_operand.vmem [shape: f32[256,8], index: 2, kind: input, shape index: {}, may-alias: {1,2}]
  %s3 = inlined_call_operand.vmem [shape: f32[8,16], index: 3, kind: input, shape index: {}]
  %s4 = inlined_call_operand.vmem [shape: f32[1,16], index: 4, kind: input, shape index: {}]
  %s5 = inlined_call_operand.vmem [shape: f32[256,16], index: 5, kind: output, shape index: {}]
  %s6 = sld [smem:[#allocation0]]
  $region61: #{gin2_forward.3} parent=0
    _
  %s8 = ssub.s32 1, %s6
  %s9 = scalar_select 0, %s8, %s6
  loop: start=0, step=1, limit=4
  $region2: #{gin2_forward.3} parent=0 // loop_pre_header
    _
  $region3: #{gin2_forward.3} parent=0 // loop_header
    %s11 = sphi 0, %s15
    %p12 = scmp.ge.s32.totalorder %s11, 4
    %s18 = sphi 0, %s30
    %s19 = sphi 0, %s26
    %s20 = sphi 0, %s18
    %s21 = sphi 0, %s19
    %s22 = sphi 0, %s20
    %s23 = sphi 0, %s21
    %s35 = sphi 0, %s37
    %s38 = sphi 0, %s35
    %s39 = sphi 0, %s38
    %s55 = sphi 0, %s39
    %s61 = sphi 0, %s63
    %s64 = sphi 0, %s61
    %s65 = sphi 0, %s64
    %s81 = sphi 0, %s65
    %s87 = sphi 0, %s89
    %s90 = sphi 0, %s87
    %s91 = sphi 0, %s90
    %s107 = sphi 0, %s91
    %s111 = sphi 0, %s111
    %s113 = sphi 0, %s111
    %s114 = sphi 0, %s113
    %s128 = sphi 0, %s114
    %s132 = sphi 0, %s132
    %s134 = sphi 0, %s132
    %s135 = sphi 0, %s134
    %s149 = sphi 0, %s135
    %s155 = sphi 0, %s157
    %s158 = sphi 0, %s155
    %s159 = sphi 0, %s158
    %s175 = sphi 0, %s159
  $region4: #{gin2_forward.3} parent=0 // loop_header_branch
    %14 = sbr.rel (%p12) target = $region8
  $region5: #{gin2_forward.3} parent=0 // loop_body
    %s16 = ssub.s32 %s11, 1
    %s17 = ssub.s32 %s11, 2
    %s24 = sadd.s32 1, %s19
    %p25 = scmp.ge.s32.totalorder %s24, 1
    %s26 = scalar_select %p25, 0, %s24
    %s27 = sadd.s32 1, %s18
    %s28 = scalar_select %p25, %s27, %s18
    %p29 = scmp.ge.s32.totalorder %s28, 2
    %s30 = scalar_select %p29, 0, %s28
    %s31 = ssub.s32 %s18, %s30
    %s32 = ssub.s32 %s19, %s26
    %s33 = sor.u32 %s31, %s32
    %p34 = scmp.eq.s32.totalorder %s33, 0
    %s36 = sadd.s32 %s35, 1
    %s37 = scalar_select %p34, %s35, %s36
    %p40 = pneg %p34
    %p41 = scmp.eq.s32.totalorder %s11, 1
    %p42 = por %p40, %p41
    %p43 = scmp.ne.s32.totalorder %s35, %s38
    %p44 = scmp.eq.s32.totalorder %s11, 0
    %p45 = por %p43, %p44
    %p46 = scmp.ne.s32.totalorder %s35, %s38
    %p47 = scmp.eq.s32.totalorder %s16, 1
    %p48 = por %p46, %p47
    %p49 = scmp.ne.s32.totalorder %s38, %s39
    %p50 = scmp.eq.s32.totalorder %s16, 0
    %p51 = por %p49, %p50
    %p52 = scmp.ne.s32.totalorder %s38, %s39
    %p53 = scmp.eq.s32.totalorder %s17, 1
    %p54 = por %p52, %p53
    %p56 = scmp.ne.s32.totalorder %s39, %s55
    %p57 = scmp.eq.s32.totalorder %s17, 0
    %p58 = por %p56, %p57
    %s59 = ssub.s32 %s19, %s26
    %p60 = scmp.eq.s32.totalorder %s59, 0
    %s62 = sadd.s32 %s61, 1
    %s63 = scalar_select %p60, %s61, %s62
    %p66 = pneg %p60
    %p67 = scmp.eq.s32.totalorder %s11, 1
    %p68 = por %p66, %p67
    %p69 = scmp.ne.s32.totalorder %s61, %s64
    %p70 = scmp.eq.s32.totalorder %s11, 0
    %p71 = por %p69, %p70
    %p72 = scmp.ne.s32.totalorder %s61, %s64
    %p73 = scmp.eq.s32.totalorder %s16, 1
    %p74 = por %p72, %p73
    %p75 = scmp.ne.s32.totalorder %s64, %s65
    %p76 = scmp.eq.s32.totalorder %s16, 0
    %p77 = por %p75, %p76
    %p78 = scmp.ne.s32.totalorder %s64, %s65
    %p79 = scmp.eq.s32.totalorder %s17, 1
    %p80 = por %p78, %p79
    %p82 = scmp.ne.s32.totalorder %s65, %s81
    %p83 = scmp.eq.s32.totalorder %s17, 0
    %p84 = por %p82, %p83
    %s85 = ssub.s32 %s18, %s30
    %p86 = scmp.eq.s32.totalorder %s85, 0
    %s88 = sadd.s32 %s87, 1
    %s89 = scalar_select %p86, %s87, %s88
    %p92 = pneg %p86
    %p93 = scmp.eq.s32.totalorder %s11, 1
    %p94 = por %p92, %p93
    %p95 = scmp.ne.s32.totalorder %s87, %s90
    %p96 = scmp.eq.s32.totalorder %s11, 0
    %p97 = por %p95, %p96
    %p98 = scmp.ne.s32.totalorder %s87, %s90
    %p99 = scmp.eq.s32.totalorder %s16, 1
    %p100 = por %p98, %p99
    %p101 = scmp.ne.s32.totalorder %s90, %s91
    %p102 = scmp.eq.s32.totalorder %s16, 0
    %p103 = por %p101, %p102
    %p104 = scmp.ne.s32.totalorder %s90, %s91
    %p105 = scmp.eq.s32.totalorder %s17, 1
    %p106 = por %p104, %p105
    %p108 = scmp.ne.s32.totalorder %s91, %s107
    %p109 = scmp.eq.s32.totalorder %s17, 0
    %p110 = por %p108, %p109
    %s112 = sadd.s32 %s111, 1
    %p115 = scmp.eq.s32.totalorder %s11, 1
    %p116 = scmp.ne.s32.totalorder %s111, %s113
    %p117 = scmp.eq.s32.totalorder %s11, 0
    %p118 = por %p116, %p117
    %p119 = scmp.ne.s32.totalorder %s111, %s113
    %p120 = scmp.eq.s32.totalorder %s16, 1
    %p121 = por %p119, %p120
    %p122 = scmp.ne.s32.totalorder %s113, %s114
    %p123 = scmp.eq.s32.totalorder %s16, 0
    %p124 = por %p122, %p123
    %p125 = scmp.ne.s32.totalorder %s113, %s114
    %p126 = scmp.eq.s32.totalorder %s17, 1
    %p127 = por %p125, %p126
    %p129 = scmp.ne.s32.totalorder %s114, %s128
    %p130 = scmp.eq.s32.totalorder %s17, 0
    %p131 = por %p129, %p130
    %s133 = sadd.s32 %s132, 1
    %p136 = scmp.eq.s32.totalorder %s11, 1
    %p137 = scmp.ne.s32.totalorder %s132, %s134
    %p138 = scmp.eq.s32.totalorder %s11, 0
    %p139 = por %p137, %p138
    %p140 = scmp.ne.s32.totalorder %s132, %s134
    %p141 = scmp.eq.s32.totalorder %s16, 1
    %p142 = por %p140, %p141
    %p143 = scmp.ne.s32.totalorder %s134, %s135
    %p144 = scmp.eq.s32.totalorder %s16, 0
    %p145 = por %p143, %p144
    %p146 = scmp.ne.s32.totalorder %s134, %s135
    %p147 = scmp.eq.s32.totalorder %s17, 1
    %p148 = por %p146, %p147
    %p150 = scmp.ne.s32.totalorder %s135, %s149
    %p151 = scmp.eq.s32.totalorder %s17, 0
    %p152 = por %p150, %p151
    %s153 = ssub.s32 %s18, %s30
    %p154 = scmp.eq.s32.totalorder %s153, 0
    %s156 = sadd.s32 %s155, 1
    %s157 = scalar_select %p154, %s155, %s156
    %p160 = pneg %p154
    %p161 = scmp.eq.s32.totalorder %s11, 1
    %p162 = por %p160, %p161
    %p163 = scmp.ne.s32.totalorder %s155, %s158
    %p164 = scmp.eq.s32.totalorder %s11, 0
    %p165 = por %p163, %p164
    %p166 = scmp.ne.s32.totalorder %s155, %s158
    %p167 = scmp.eq.s32.totalorder %s16, 1
    %p168 = por %p166, %p167
    %p169 = scmp.ne.s32.totalorder %s158, %s159
    %p170 = scmp.eq.s32.totalorder %s16, 0
    %p171 = por %p169, %p170
    %p172 = scmp.ne.s32.totalorder %s158, %s159
    %p173 = scmp.eq.s32.totalorder %s17, 1
    %p174 = por %p172, %p173
    %p176 = scmp.ne.s32.totalorder %s159, %s175
    %p177 = scmp.eq.s32.totalorder %s17, 0
    %p178 = por %p176, %p177
    %p179 = scmp.le.s32.totalorder 1, %s11
    %p180 = scmp.lt.s32.totalorder %s11, 3
    %p181 = pnand %p179, %p180
    %p182 = pneg %p181
    // Predicated region
    $region9: #{gin2_forward.3} parent=5 // pred_check
      _
    $region10: #{gin2_forward.3} parent=5 // pred_check_branch
      %184 = sbr.rel (%p181) target = $region12
    $region11: #{gin2_forward.3} parent=5 // pred_region
      %s185 = ssub.s32 %s11, 1
      // Predicated region
      $region13: #{gin2_forward.3} parent=11 // pred_check
        %p186 = pneg %p77
      $region14: #{gin2_forward.3} parent=11 // pred_check_branch
        %188 = sbr.rel (%p186) target = $region16
      $region15: #{gin2_forward.3} parent=11 // pred_region
        %s189 = smul.u32 32, %s21
        %p190 = scmp.lt.s32.totalorder %s189, 31
        %s191 = scalar_select %p190, %s189, 31
        %s192 = smul.addr %s191, 8
        %s193 = scalar_lea.vmem %s1, %s192
        %s194 = smul.u32 32, %s21
      $region16: #{gin2_forward.3} parent=11 // pred_fallthru
        _
      // Predicated region
      $region17: #{gin2_forward.3} parent=11 // pred_check
        %p195 = pneg %p124
      $region18: #{gin2_forward.3} parent=11 // pred_check_branch
        %197 = sbr.rel (%p195) target = $region20
      $region19: #{gin2_forward.3} parent=11 // pred_region
        _
      $region20: #{gin2_forward.3} parent=11 // pred_fallthru
        _
      // Predicated region
      $region21: #{gin2_forward.3} parent=11 // pred_check
        %p198 = pneg %p145
      $region22: #{gin2_forward.3} parent=11 // pred_check_branch
        %200 = sbr.rel (%p198) target = $region24
      $region23: #{gin2_forward.3} parent=11 // pred_region
        _
      $region24: #{gin2_forward.3} parent=11 // pred_fallthru
        _
    $region12: #{gin2_forward.3} parent=5 // pred_fallthru
      _
    %p201 = scmp.lt.s32.totalorder %s11, 2
    // Predicated region
    $region25: #{gin2_forward.3} parent=5 // pred_check
      %p202 = pneg %p201
    $region26: #{gin2_forward.3} parent=5 // pred_check_branch
      %204 = sbr.rel (%p202) target = $region28
    $region27: #{gin2_forward.3} parent=5 // pred_region
      // Predicated region
      $region29: #{gin2_forward.3} parent=27 // pred_check
        %p205 = pneg %p45
      $region30: #{gin2_forward.3} parent=27 // pred_check_branch
        %207 = sbr.rel (%p205) target = $region32
      $region31: #{gin2_forward.3} parent=27 // pred_region
        %s208 = smul.u32 16, %s18
        %s209 = smul.u32 2, %s19
        %p210 = scmp.lt.s32.totalorder %s208, 31
        %s211 = scalar_select %p210, %s208, 31
        %p212 = scmp.lt.s32.totalorder %s209, 1
        %s213 = scalar_select %p212, %s209, 1
        %s214 = smul.addr %s211, 2
        %s215 = sadd.s32 %s213, %s214
        %s216 = smul.addr %s215, 4
        %s217 = scalar_lea.vmem %s0, %s216
        %s218 = smul.u32 16, %s18
        %s219 = smul.u32 2, %s19
      $region32: #{gin2_forward.3} parent=27 // pred_fallthru
        _
      // Predicated region
      $region33: #{gin2_forward.3} parent=27 // pred_check
        %p220 = pneg %p97
      $region34: #{gin2_forward.3} parent=27 // pred_check_branch
        %222 = sbr.rel (%p220) target = $region36
      $region35: #{gin2_forward.3} parent=27 // pred_region
        %s223 = smul.u32 16, %s18
        %p224 = scmp.lt.s32.totalorder %s223, 31
        %s225 = scalar_select %p224, %s223, 31
        %s226 = smul.addr %s225, 8
        %s227 = scalar_lea.vmem %s2, %s226
        %s228 = smul.u32 16, %s18
      $region36: #{gin2_forward.3} parent=27 // pred_fallthru
        _
    $region28: #{gin2_forward.3} parent=5 // pred_fallthru
      _
    %p229 = scmp.le.s32.totalorder 1, %s11
    %p230 = scmp.lt.s32.totalorder %s11, 3
    %p231 = pnand %p229, %p230
    %p232 = pneg %p231
    // Predicated region
    $region37: #{gin2_forward.3} parent=5 // pred_check
      _
    $region38: #{gin2_forward.3} parent=5 // pred_check_branch
      %234 = sbr.rel (%p231) target = $region40
    $region39: #{gin2_forward.3} parent=5 // pred_region
      %s235 = ssub.s32 %s11, 1
      %s236 = smul.u32 16, %s20
      %s237 = smul.u32 2, %s21
      %p238 = scmp.lt.s32.totalorder %s236, 31
      %s239 = scalar_select %p238, %s236, 31
      %p240 = scmp.lt.s32.totalorder %s237, 1
      %s241 = scalar_select %p240, %s237, 1
      %s242 = smul.addr %s239, 2
      %s243 = sadd.s32 %s241, %s242
      %s244 = smul.addr %s243, 4
      %s245 = scalar_lea.vmem %s0, %s244
      %p246 = pneg %p51
      %p247 = pneg %p48
      %s248 = smul.u32 32, %s21
      %p249 = scmp.lt.s32.totalorder %s248, 31
      %s250 = scalar_select %p249, %s248, 31
      %s251 = smul.addr %s250, 8
      %s252 = scalar_lea.vmem %s1, %s251
      %p253 = pneg %p77
      %p254 = pneg %p74
      %s255 = smul.u32 16, %s20
      %p256 = scmp.lt.s32.totalorder %s255, 31
      %s257 = scalar_select %p256, %s255, 31
      %s258 = smul.addr %s257, 8
      %s259 = scalar_lea.vmem %s2, %s258
      %p260 = pneg %p103
      %p261 = pneg %p100
      %p262 = pneg %p124
      %p263 = pneg %p121
      %p264 = pneg %p145
      %p265 = pneg %p142
      %p266 = pneg %p171
      %p267 = pneg %p168
      %s268 = smul.u32 16, %s20
      %p269 = scmp.lt.s32.totalorder %s268, 31
      %s270 = scalar_select %p269, %s268, 31
      %s271 = smul.addr %s270, 8
      %s272 = scalar_lea.vmem %s5, %s271
      %s273 = smul.u32 16, %s20
      %s274 = smul.u32 2, %s21
      %p275 = scmp.lt.s32.totalorder %s273, 31
      %s276 = scalar_select %p275, %s273, 31
      %p277 = scmp.lt.s32.totalorder %s274, 1
      %s278 = scalar_select %p277, %s274, 1
      %s279 = smul.addr %s276, 2
      %s280 = sadd.s32 %s278, %s279
      %s281 = smul.addr %s280, 4
      %s282 = scalar_lea.vmem %s0, %s281
      %s283 = smul.u32 16, %s20
      %s284 = smul.u32 2, %s21
      %s285 = smul.u32 32, %s21
      %p286 = scmp.lt.s32.totalorder %s285, 31
      %s287 = scalar_select %p286, %s285, 31
      %s288 = smul.addr %s287, 8
      %s289 = scalar_lea.vmem %s1, %s288
      %s290 = smul.u32 32, %s21
      %s291 = smul.u32 16, %s20
      %p292 = scmp.lt.s32.totalorder %s291, 31
      %s293 = scalar_select %p292, %s291, 31
      %s294 = smul.addr %s293, 8
      %s295 = scalar_lea.vmem %s2, %s294
      %s296 = smul.u32 16, %s20
      %s297 = smul.u32 16, %s20
      %p298 = scmp.lt.s32.totalorder %s297, 31
      %s299 = scalar_select %p298, %s297, 31
      %s300 = smul.addr %s299, 8
      %s301 = scalar_lea.vmem %s5, %s300
      %s302 = smul.u32 16, %s20
      %p304 = scmp.eq.s32.totalorder %s21, 0
      // Predicated region
      $region41: #{gin2_forward.3} parent=39 // pred_check
        %p305 = pneg %p304
      $region42: #{gin2_forward.3} parent=39 // pred_check_branch
        %307 = sbr.rel (%p305) target = $region44
      $region43: #{gin2_forward.3} parent=39 // pred_region
        %vm308 = vcmask 64512
        %309 = vst.msk [vmem:[#allocation2] sm:$0xff] %vm308, 0.0
        %310 = vst.msk [vmem:[#allocation2 + $0x8] sm:$0xff] %vm308, 0.0
        %311 = vst.msk [vmem:[#allocation2 + $0x10] sm:$0xff] %vm308, 0.0
        %312 = vst.msk [vmem:[#allocation2 + $0x18] sm:$0xff] %vm308, 0.0
        %313 = vst.msk [vmem:[#allocation2 + $0x20] sm:$0xff] %vm308, 0.0
        %314 = vst.msk [vmem:[#allocation2 + $0x28] sm:$0xff] %vm308, 0.0
        %315 = vst.msk [vmem:[#allocation2 + $0x30] sm:$0xff] %vm308, 0.0
        %316 = vst.msk [vmem:[#allocation2 + $0x38] sm:$0xff] %vm308, 0.0
        %317 = vst.msk [vmem:[#allocation2 + $0x40] sm:$0xff] %vm308, 0.0
        %318 = vst.msk [vmem:[#allocation2 + $0x48] sm:$0xff] %vm308, 0.0
        %319 = vst.msk [vmem:[#allocation2 + $0x50] sm:$0xff] %vm308, 0.0
        %320 = vst.msk [vmem:[#allocation2 + $0x58] sm:$0xff] %vm308, 0.0
        %321 = vst.msk [vmem:[#allocation2 + $0x60] sm:$0xff] %vm308, 0.0
        %322 = vst.msk [vmem:[#allocation2 + $0x68] sm:$0xff] %vm308, 0.0
        %323 = vst.msk [vmem:[#allocation2 + $0x70] sm:$0xff] %vm308, 0.0
        %324 = vst.msk [vmem:[#allocation2 + $0x78] sm:$0xff] %vm308, 0.0
      $region44: #{gin2_forward.3} parent=39 // pred_fallthru
        _
      %v325 = vld [vmem:[#allocation2] sm:$0xff]
      %v326 = vld [vmem:[#allocation2 + $0x8] sm:$0xff]
      %v327 = vld [vmem:[#allocation2 + $0x10] sm:$0xff]
      %v328 = vld [vmem:[#allocation2 + $0x18] sm:$0xff]
      %v329 = vld [vmem:[#allocation2 + $0x20] sm:$0xff]
      %v330 = vld [vmem:[#allocation2 + $0x28] sm:$0xff]
      %v331 = vld [vmem:[#allocation2 + $0x30] sm:$0xff]
      %v332 = vld [vmem:[#allocation2 + $0x38] sm:$0xff]
      %v333 = vld [vmem:[#allocation2 + $0x40] sm:$0xff]
      %v334 = vld [vmem:[#allocation2 + $0x48] sm:$0xff]
      %v335 = vld [vmem:[#allocation2 + $0x50] sm:$0xff]
      %v336 = vld [vmem:[#allocation2 + $0x58] sm:$0xff]
      %v337 = vld [vmem:[#allocation2 + $0x60] sm:$0xff]
      %v338 = vld [vmem:[#allocation2 + $0x68] sm:$0xff]
      %v339 = vld [vmem:[#allocation2 + $0x70] sm:$0xff]
      %v340 = vld [vmem:[#allocation2 + $0x78] sm:$0xff]
      %v341 = vld [vmem:[%s282] sm:$0xff]
      %v342 = vld [vmem:[%s282 + $0x8] sm:$0xff]
      %v343 = vld [vmem:[%s282 + $0x10] sm:$0xff]
      %v344 = vld [vmem:[%s282 + $0x18] sm:$0xff]
      %v345 = vld [vmem:[%s282 + $0x20] sm:$0xff]
      %v346 = vld [vmem:[%s282 + $0x28] sm:$0xff]
      %v347 = vld [vmem:[%s282 + $0x30] sm:$0xff]
      %v348 = vld [vmem:[%s282 + $0x38] sm:$0xff]
      %v349 = vld [vmem:[%s282 + $0x40] sm:$0xff]
      %v350 = vld [vmem:[%s282 + $0x48] sm:$0xff]
      %v351 = vld [vmem:[%s282 + $0x50] sm:$0xff]
      %v352 = vld [vmem:[%s282 + $0x58] sm:$0xff]
      %v353 = vld [vmem:[%s282 + $0x60] sm:$0xff]
      %v354 = vld [vmem:[%s282 + $0x68] sm:$0xff]
      %v355 = vld [vmem:[%s282 + $0x70] sm:$0xff]
      %v356 = vld [vmem:[%s282 + $0x78] sm:$0xff]
      %v357 = vld [vmem:[%s289] sm:$0xff]
      %v358 = vld [vmem:[%s289 + $0x8] sm:$0xff]
      %v359 = vld [vmem:[%s289 + $0x10] sm:$0xff]
      %v360 = vld [vmem:[%s289 + $0x18] sm:$0xff]
      %v361 = vld [vmem:[%s289 + $0x20] sm:$0xff]
      %v362 = vld [vmem:[%s289 + $0x28] sm:$0xff]
      %v363 = vld [vmem:[%s289 + $0x30] sm:$0xff]
      %v364 = vld [vmem:[%s289 + $0x38] sm:$0xff]
      %v365 = vld [vmem:[%s289 + $0x40] sm:$0xff]
      %v366 = vld [vmem:[%s289 + $0x48] sm:$0xff]
      %v367 = vld [vmem:[%s289 + $0x50] sm:$0xff]
      %v368 = vld [vmem:[%s289 + $0x58] sm:$0xff]
      %v369 = vld [vmem:[%s289 + $0x60] sm:$0xff]
      %v370 = vld [vmem:[%s289 + $0x68] sm:$0xff]
      %v371 = vld [vmem:[%s289 + $0x70] sm:$0xff]
      %v372 = vld [vmem:[%s289 + $0x78] sm:$0xff]
      %v373 = vld [vmem:[%s289 + $0x80] sm:$0xff]
      %v374 = vld [vmem:[%s289 + $0x88] sm:$0xff]
      %v375 = vld [vmem:[%s289 + $0x90] sm:$0xff]
      %v376 = vld [vmem:[%s289 + $0x98] sm:$0xff]
      %v377 = vld [vmem:[%s289 + $0xa0] sm:$0xff]
      %v378 = vld [vmem:[%s289 + $0xa8] sm:$0xff]
      %v379 = vld [vmem:[%s289 + $0xb0] sm:$0xff]
      %v380 = vld [vmem:[%s289 + $0xb8] sm:$0xff]
      %v381 = vld [vmem:[%s289 + $0xc0] sm:$0xff]
      %v382 = vld [vmem:[%s289 + $0xc8] sm:$0xff]
      %v383 = vld [vmem:[%s289 + $0xd0] sm:$0xff]
      %v384 = vld [vmem:[%s289 + $0xd8] sm:$0xff]
      %v385 = vld [vmem:[%s289 + $0xe0] sm:$0xff]
      %v386 = vld [vmem:[%s289 + $0xe8] sm:$0xff]
      %v387 = vld [vmem:[%s289 + $0xf0] sm:$0xff]
      %v388 = vld [vmem:[%s289 + $0xf8] sm:$0xff]
      %v389 = vpack.c.bf16 %v358, %v357
      %v390 = vpack.c.bf16 %v360, %v359
      %v391 = vpack.c.bf16 %v362, %v361
      %v392 = vpack.c.bf16 %v364, %v363
      %v393 = vpack.c.bf16 %v366, %v365
      %v394 = vpack.c.bf16 %v368, %v367
      %v395 = vpack.c.bf16 %v370, %v369
      %v396 = vpack.c.bf16 %v372, %v371
      %v397 = vpack.c.bf16 %v374, %v373
      %v398 = vpack.c.bf16 %v376, %v375
      %v399 = vpack.c.bf16 %v378, %v377
      %v400 = vpack.c.bf16 %v380, %v379
      %v401 = vpack.c.bf16 %v382, %v381
      %v402 = vpack.c.bf16 %v384, %v383
      %v403 = vpack.c.bf16 %v386, %v385
      %v404 = vpack.c.bf16 %v388, %v387
      %v421 = vunpack.c.l.b16 %v341
      %v422 = vunpack.c.h.b16 %v341
      %v423 = vunpack.c.l.b16 %v342
      %v424 = vunpack.c.h.b16 %v342
      %v425 = vunpack.c.l.b16 %v343
      %v426 = vunpack.c.h.b16 %v343
      %v427 = vunpack.c.l.b16 %v344
      %v428 = vunpack.c.h.b16 %v344
      %v429 = vunpack.c.l.b16 %v345
      %v430 = vunpack.c.h.b16 %v345
      %v431 = vunpack.c.l.b16 %v346
      %v432 = vunpack.c.h.b16 %v346
      %v433 = vunpack.c.l.b16 %v347
      %v434 = vunpack.c.h.b16 %v347
      %v435 = vunpack.c.l.b16 %v348
      %v436 = vunpack.c.h.b16 %v348
      %v437 = vunpack.c.l.b16 %v349
      %v438 = vunpack.c.h.b16 %v349
      %v439 = vunpack.c.l.b16 %v350
      %v440 = vunpack.c.h.b16 %v350
      %v441 = vunpack.c.l.b16 %v351
      %v442 = vunpack.c.h.b16 %v351
      %v443 = vunpack.c.l.b16 %v352
      %v444 = vunpack.c.h.b16 %v352
      %v445 = vunpack.c.l.b16 %v353
      %v446 = vunpack.c.h.b16 %v353
      %v447 = vunpack.c.l.b16 %v354
      %v448 = vunpack.c.h.b16 %v354
      %v449 = vunpack.c.l.b16 %v355
      %v450 = vunpack.c.h.b16 %v355
      %v451 = vunpack.c.l.b16 %v356
      %v452 = vunpack.c.h.b16 %v356
      %v453 = vpack.c.b16 %v423, %v421
      %v454 = vpack.c.b16 %v424, %v422
      %v455 = vpack.c.b16 %v427, %v425
      %v456 = vpack.c.b16 %v428, %v426
      %v457 = vpack.c.b16 %v431, %v429
      %v458 = vpack.c.b16 %v432, %v430
      %v459 = vpack.c.b16 %v435, %v433
      %v460 = vpack.c.b16 %v436, %v434
      %v461 = vpack.c.b16 %v439, %v437
      %v462 = vpack.c.b16 %v440, %v438
      %v463 = vpack.c.b16 %v443, %v441
      %v464 = vpack.c.b16 %v444, %v442
      %v465 = vpack.c.b16 %v447, %v445
      %v466 = vpack.c.b16 %v448, %v446
      %v467 = vpack.c.b16 %v451, %v449
      %v468 = vpack.c.b16 %v452, %v450
      %485 = vmatprep.subr.bf16.mxu0 0
      %486 = vmatpush1.bf16.msra.mxu0 %v389
      %487 = vmatprep.subr.bf16.mxu0 0
      %488 = vmatpush1.bf16.msra.mxu0 %v390
      %489 = vmatprep.subr.bf16.mxu0 0
      %490 = vmatpush1.bf16.msra.mxu0 %v391
      %491 = vmatprep.subr.bf16.mxu0 0
      %492 = vmatpush1.bf16.msra.mxu0 %v392
      %493 = vmatprep.subr.bf16.mxu0 0
      %494 = vmatpush1.bf16.msra.mxu0 %v393
      %495 = vmatprep.subr.bf16.mxu0 0
      %496 = vmatpush1.bf16.msra.mxu0 %v394
      %497 = vmatprep.subr.bf16.mxu0 0
      %498 = vmatpush1.bf16.msra.mxu0 %v395
      %499 = vmatprep.subr.bf16.mxu0 0
      %500 = vmatpush1.bf16.msra.mxu0 %v396
      %501 = vmatprep.subr.bf16.mxu0 0
      %502 = vmatpush1.bf16.msra.mxu0 %v397
      %503 = vmatprep.subr.bf16.mxu0 0
      %504 = vmatpush1.bf16.msra.mxu0 %v398
      %505 = vmatprep.subr.bf16.mxu0 0
      %506 = vmatpush1.bf16.msra.mxu0 %v399
      %507 = vmatprep.subr.bf16.mxu0 0
      %508 = vmatpush1.bf16.msra.mxu0 %v400
      %509 = vmatprep.subr.bf16.mxu0 0
      %510 = vmatpush1.bf16.msra.mxu0 %v401
      %511 = vmatprep.subr.bf16.mxu0 0
      %512 = vmatpush1.bf16.msra.mxu0 %v402
      %513 = vmatprep.subr.bf16.mxu0 0
      %514 = vmatpush1.bf16.msra.mxu0 %v403
      %515 = vmatprep.subr.bf16.mxu0 0
      %516 = vmatpush1.bf16.msra.mxu0 %v404
      %517 = vmatprep.mubr.bf16.mxu0 %v454
      %518 = vmatmul.mubr.bf16.gmra.mrb[0].mxu0 %v453
      %v519 = vpop.f32.mrb[0].mxu0
      %v520 = vadd.f32 0.0, %v519
      %v521 = vpop.f32.mrb[0].mxu0
      %v522 = vpop.f32.mrb[0].mxu0
      %v523 = vadd.f32 0.0, %v522
      %v524 = vpop.f32.mrb[0].mxu0
      %525 = vmatprep.mubr.bf16.mxu0 %v456
      %526 = vmatmul.mubr.bf16.gmra.mrb[0].mxu0 %v455
      %v527 = vpop.f32.mrb[0].mxu0
      %v528 = vadd.f32 0.0, %v527
      %v529 = vpop.f32.mrb[0].mxu0
      %v530 = vpop.f32.mrb[0].mxu0
      %v531 = vadd.f32 0.0, %v530
      %v532 = vpop.f32.mrb[0].mxu0
      %533 = vmatprep.mubr.bf16.mxu0 %v458
      %534 = vmatmul.mubr.bf16.gmra.mrb[0].mxu0 %v457
      %v535 = vpop.f32.mrb[0].mxu0
      %v536 = vadd.f32 0.0, %v535
      %v537 = vpop.f32.mrb[0].mxu0
      %v538 = vpop.f32.mrb[0].mxu0
      %v539 = vadd.f32 0.0, %v538
      %v540 = vpop.f32.mrb[0].mxu0
      %541 = vmatprep.mubr.bf16.mxu0 %v460
      %542 = vmatmul.mubr.bf16.gmra.mrb[0].mxu0 %v459
      %v543 = vpop.f32.mrb[0].mxu0
      %v544 = vadd.f32 0.0, %v543
      %v545 = vpop.f32.mrb[0].mxu0
      %v546 = vpop.f32.mrb[0].mxu0
      %v547 = vadd.f32 0.0, %v546
      %v548 = vpop.f32.mrb[0].mxu0
      %549 = vmatprep.mubr.bf16.mxu0 %v462
      %550 = vmatmul.mubr.bf16.gmra.mrb[0].mxu0 %v461
      %v551 = vpop.f32.mrb[0].mxu0
      %v552 = vadd.f32 0.0, %v551
      %v553 = vpop.f32.mrb[0].mxu0
      %v554 = vpop.f32.mrb[0].mxu0
      %v555 = vadd.f32 0.0, %v554
      %v556 = vpop.f32.mrb[0].mxu0
      %557 = vmatprep.mubr.bf16.mxu0 %v464
      %558 = vmatmul.mubr.bf16.gmra.mrb[0].mxu0 %v463
      %v559 = vpop.f32.mrb[0].mxu0
      %v560 = vadd.f32 0.0, %v559
      %v561 = vpop.f32.mrb[0].mxu0
      %v562 = vpop.f32.mrb[0].mxu0
      %v563 = vadd.f32 0.0, %v562
      %v564 = vpop.f32.mrb[0].mxu0
      %565 = vmatprep.mubr.bf16.mxu0 %v466
      %566 = vmatmul.mubr.bf16.gmra.mrb[0].mxu0 %v465
      %v567 = vpop.f32.mrb[0].mxu0
      %v568 = vadd.f32 0.0, %v567
      %v569 = vpop.f32.mrb[0].mxu0
      %v570 = vpop.f32.mrb[0].mxu0
      %v571 = vadd.f32 0.0, %v570
      %v572 = vpop.f32.mrb[0].mxu0
      %573 = vmatprep.mubr.bf16.mxu0 %v468
      %574 = vmatmul.mubr.bf16.gmra.mrb[0].mxu0 %v467
      %v575 = vpop.f32.mrb[0].mxu0
      %v576 = vadd.f32 0.0, %v575
      %v577 = vpop.f32.mrb[0].mxu0
      %v578 = vpop.f32.mrb[0].mxu0
      %v579 = vadd.f32 0.0, %v578
      %v580 = vpop.f32.mrb[0].mxu0
      %581 = vdwg.mxu0
      %v582 = vadd.f32 %v325, %v520
      %v583 = vadd.f32 %v326, %v523
      %v584 = vadd.f32 %v327, %v528
      %v585 = vadd.f32 %v328, %v531
      %v586 = vadd.f32 %v329, %v536
      %v587 = vadd.f32 %v330, %v539
      %v588 = vadd.f32 %v331, %v544
      %v589 = vadd.f32 %v332, %v547
      %v590 = vadd.f32 %v333, %v552
      %v591 = vadd.f32 %v334, %v555
      %v592 = vadd.f32 %v335, %v560
      %v593 = vadd.f32 %v336, %v563
      %v594 = vadd.f32 %v337, %v568
      %v595 = vadd.f32 %v338, %v571
      %v596 = vadd.f32 %v339, %v576
      %v597 = vadd.f32 %v340, %v579
      %vm598 = vcmask 64512
      %599 = vst.msk [vmem:[#allocation2] sm:$0xff] %vm598, %v582
      %600 = vst.msk [vmem:[#allocation2 + $0x8] sm:$0xff] %vm598, %v583
      %601 = vst.msk [vmem:[#allocation2 + $0x10] sm:$0xff] %vm598, %v584
      %602 = vst.msk [vmem:[#allocation2 + $0x18] sm:$0xff] %vm598, %v585
      %603 = vst.msk [vmem:[#allocation2 + $0x20] sm:$0xff] %vm598, %v586
      %604 = vst.msk [vmem:[#allocation2 + $0x28] sm:$0xff] %vm598, %v587
      %605 = vst.msk [vmem:[#allocation2 + $0x30] sm:$0xff] %vm598, %v588
      %606 = vst.msk [vmem:[#allocation2 + $0x38] sm:$0xff] %vm598, %v589
      %607 = vst.msk [vmem:[#allocation2 + $0x40] sm:$0xff] %vm598, %v590
      %608 = vst.msk [vmem:[#allocation2 + $0x48] sm:$0xff] %vm598, %v591
      %609 = vst.msk [vmem:[#allocation2 + $0x50] sm:$0xff] %vm598, %v592
      %610 = vst.msk [vmem:[#allocation2 + $0x58] sm:$0xff] %vm598, %v593
      %611 = vst.msk [vmem:[#allocation2 + $0x60] sm:$0xff] %vm598, %v594
      %612 = vst.msk [vmem:[#allocation2 + $0x68] sm:$0xff] %vm598, %v595
      %613 = vst.msk [vmem:[#allocation2 + $0x70] sm:$0xff] %vm598, %v596
      %614 = vst.msk [vmem:[#allocation2 + $0x78] sm:$0xff] %vm598, %v597
      // Predicated region
      $region45: #{gin2_forward.3} parent=39 // pred_check
        %p615 = pneg %p304
      $region46: #{gin2_forward.3} parent=39 // pred_check_branch
        %617 = sbr.rel (%p615) target = $region48
      $region47: #{gin2_forward.3} parent=39 // pred_region
        %v618 = vld [vmem:[%s295] sm:$0xff]
        %v619 = vld [vmem:[%s295 + $0x8] sm:$0xff]
        %v620 = vld [vmem:[%s295 + $0x10] sm:$0xff]
        %v621 = vld [vmem:[%s295 + $0x18] sm:$0xff]
        %v622 = vld [vmem:[%s295 + $0x20] sm:$0xff]
        %v623 = vld [vmem:[%s295 + $0x28] sm:$0xff]
        %v624 = vld [vmem:[%s295 + $0x30] sm:$0xff]
        %v625 = vld [vmem:[%s295 + $0x38] sm:$0xff]
        %v626 = vld [vmem:[%s295 + $0x40] sm:$0xff]
        %v627 = vld [vmem:[%s295 + $0x48] sm:$0xff]
        %v628 = vld [vmem:[%s295 + $0x50] sm:$0xff]
        %v629 = vld [vmem:[%s295 + $0x58] sm:$0xff]
        %v630 = vld [vmem:[%s295 + $0x60] sm:$0xff]
        %v631 = vld [vmem:[%s295 + $0x68] sm:$0xff]
        %v632 = vld [vmem:[%s295 + $0x70] sm:$0xff]
        %v633 = vld [vmem:[%s295 + $0x78] sm:$0xff]
        %v634 = vld [vmem:[#allocation2] sm:$0xff]
        %v635 = vld [vmem:[#allocation2 + $0x8] sm:$0xff]
        %v636 = vld [vmem:[#allocation2 + $0x10] sm:$0xff]
        %v637 = vld [vmem:[#allocation2 + $0x18] sm:$0xff]
        %v638 = vld [vmem:[#allocation2 + $0x20] sm:$0xff]
        %v639 = vld [vmem:[#allocation2 + $0x28] sm:$0xff]
        %v640 = vld [vmem:[#allocation2 + $0x30] sm:$0xff]
        %v641 = vld [vmem:[#allocation2 + $0x38] sm:$0xff]
        %v642 = vld [vmem:[#allocation2 + $0x40] sm:$0xff]
        %v643 = vld [vmem:[#allocation2 + $0x48] sm:$0xff]
        %v644 = vld [vmem:[#allocation2 + $0x50] sm:$0xff]
        %v645 = vld [vmem:[#allocation2 + $0x58] sm:$0xff]
        %v646 = vld [vmem:[#allocation2 + $0x60] sm:$0xff]
        %v647 = vld [vmem:[#allocation2 + $0x68] sm:$0xff]
        %v648 = vld [vmem:[#allocation2 + $0x70] sm:$0xff]
        %v649 = vld [vmem:[#allocation2 + $0x78] sm:$0xff]
        %v650 = vadd.f32 %v618, %v634
        %v651 = vadd.f32 %v619, %v635
        %v652 = vadd.f32 %v620, %v636
        %v653 = vadd.f32 %v621, %v637
        %v654 = vadd.f32 %v622, %v638
        %v655 = vadd.f32 %v623, %v639
        %v656 = vadd.f32 %v624, %v640
        %v657 = vadd.f32 %v625, %v641
        %v658 = vadd.f32 %v626, %v642
        %v659 = vadd.f32 %v627, %v643
        %v660 = vadd.f32 %v628, %v644
        %v661 = vadd.f32 %v629, %v645
        %v662 = vadd.f32 %v630, %v646
        %v663 = vadd.f32 %v631, %v647
        %v664 = vadd.f32 %v632, %v648
        %v665 = vadd.f32 %v633, %v649
        %v666 = vld [vmem:[%s3] sm:$0xff]
        %v667 = vld [vmem:[%s4] sm:$0x1]
        %v669 = vlaneseq
        %v670 = vshrl.u32 %v669, 7
        %v671 = vsub.s32 0, %v670
        %v672 = vrot.slane %v667, %v671
        %v675 = vsel %vm598, %v650, 0
        %v678 = vsel %vm598, %v651, 0
        %v681 = vsel %vm598, %v652, 0
        %v684 = vsel %vm598, %v653, 0
        %v687 = vsel %vm598, %v654, 0
        %v690 = vsel %vm598, %v655, 0
        %v693 = vsel %vm598, %v656, 0
        %v696 = vsel %vm598, %v657, 0
        %v699 = vsel %vm598, %v658, 0
        %v702 = vsel %vm598, %v659, 0
        %v705 = vsel %vm598, %v660, 0
        %v708 = vsel %vm598, %v661, 0
        %v711 = vsel %vm598, %v662, 0
        %v714 = vsel %vm598, %v663, 0
        %v717 = vsel %vm598, %v664, 0
        %v720 = vsel %vm598, %v665, 0
        %722 = vmatprep.subr.mxu0 0.0
        %723 = vmatpush1.msra.mxu0 %v666
        %724 = vmatprep.subr.mxu0 0.0
        %725 = vmatpush1.msra.mxu0 0.0
        %726 = vmatprep.subr.mxu0 0.0
        %727 = vmatpush1.msra.mxu0 0.0
        %728 = vmatprep.subr.mxu0 0.0
        %729 = vmatpush1.msra.mxu0 0.0
        %730 = vmatprep.subr.mxu0 0.0
        %731 = vmatpush1.msra.mxu0 0.0
        %732 = vmatprep.subr.mxu0 0.0
        %733 = vmatpush1.msra.mxu0 0.0
        %734 = vmatprep.subr.mxu0 0.0
        %735 = vmatpush1.msra.mxu0 0.0
        %736 = vmatprep.subr.mxu0 0.0
        %737 = vmatpush1.msra.mxu0 0.0
        %738 = vmatprep.subr.mxu0 0.0
        %739 = vmatpush1.msra.mxu0 0.0
        %740 = vmatprep.subr.mxu0 0.0
        %741 = vmatpush1.msra.mxu0 0.0
        %742 = vmatprep.subr.mxu0 0.0
        %743 = vmatpush1.msra.mxu0 0.0
        %744 = vmatprep.subr.mxu0 0.0
        %745 = vmatpush1.msra.mxu0 0.0
        %746 = vmatprep.subr.mxu0 0.0
        %747 = vmatpush1.msra.mxu0 0.0
        %748 = vmatprep.subr.mxu0 0.0
        %749 = vmatpush1.msra.mxu0 0.0
        %750 = vmatprep.subr.mxu0 0.0
        %751 = vmatpush1.msra.mxu0 0.0
        %752 = vmatprep.subr.mxu0 0.0
        %753 = vmatpush1.msra.mxu0 0.0
        %754 = vmatprep.subr.mxu0 0.0
        %755 = vmatpush1.msra.mxu0 0.0
        %756 = vmatprep.subr.mxu0 0.0
        %757 = vmatpush1.msra.mxu0 0.0
        %758 = vmatprep.subr.mxu0 0.0
        %759 = vmatpush1.msra.mxu0 0.0
        %760 = vmatprep.subr.mxu0 0.0
        %761 = vmatpush1.msra.mxu0 0.0
        %762 = vmatprep.subr.mxu0 0.0
        %763 = vmatpush1.msra.mxu0 0.0
        %764 = vmatprep.subr.mxu0 0.0
        %765 = vmatpush1.msra.mxu0 0.0
        %766 = vmatprep.subr.mxu0 0.0
        %767 = vmatpush1.msra.mxu0 0.0
        %768 = vmatprep.subr.mxu0 0.0
        %769 = vmatpush1.msra.mxu0 0.0
        %770 = vmatprep.subr.mxu0 0.0
        %771 = vmatpush1.msra.mxu0 0.0
        %772 = vmatprep.subr.mxu0 0.0
        %773 = vmatpush1.msra.mxu0 0.0
        %774 = vmatprep.subr.mxu0 0.0
        %775 = vmatpush1.msra.mxu0 0.0
        %776 = vmatprep.subr.mxu0 0.0
        %777 = vmatpush1.msra.mxu0 0.0
        %778 = vmatprep.subr.mxu0 0.0
        %779 = vmatpush1.msra.mxu0 0.0
        %780 = vmatprep.subr.mxu0 0.0
        %781 = vmatpush1.msra.mxu0 0.0
        %782 = vmatprep.subr.mxu0 0.0
        %783 = vmatpush1.msra.mxu0 0.0
        %784 = vmatprep.subr.mxu0 0.0
        %785 = vmatpush1.msra.mxu0 0.0
        %786 = vmatprep.mubr.f32.mxu0 0.0
        %787 = vmatmul.mubr.f32.gmra.mrb[0].mxu0 %v675
        %v788 = vpop.f32.mrb[0].mxu0
        %v789 = vadd.f32 %v672, %v788
        %v790 = vpop.f32.mrb[0].mxu0
        %791 = vmatprep.mubr.f32.mxu0 0.0
        %792 = vmatmul.mubr.f32.gmra.mrb[0].mxu0 %v678
        %v793 = vpop.f32.mrb[0].mxu0
        %v794 = vadd.f32 %v672, %v793
        %v795 = vpop.f32.mrb[0].mxu0
        %796 = vmatprep.mubr.f32.mxu0 0.0
        %797 = vmatmul.mubr.f32.gmra.mrb[0].mxu0 %v681
        %v798 = vpop.f32.mrb[0].mxu0
        %v799 = vadd.f32 %v672, %v798
        %v800 = vpop.f32.mrb[0].mxu0
        %801 = vmatprep.mubr.f32.mxu0 0.0
        %802 = vmatmul.mubr.f32.gmra.mrb[0].mxu0 %v684
        %v803 = vpop.f32.mrb[0].mxu0
        %v804 = vadd.f32 %v672, %v803
        %v805 = vpop.f32.mrb[0].mxu0
        %806 = vmatprep.mubr.f32.mxu0 0.0
        %807 = vmatmul.mubr.f32.gmra.mrb[0].mxu0 %v687
        %v808 = vpop.f32.mrb[0].mxu0
        %v809 = vadd.f32 %v672, %v808
        %v810 = vpop.f32.mrb[0].mxu0
        %811 = vmatprep.mubr.f32.mxu0 0.0
        %812 = vmatmul.mubr.f32.gmra.mrb[0].mxu0 %v690
        %v813 = vpop.f32.mrb[0].mxu0
        %v814 = vadd.f32 %v672, %v813
        %v815 = vpop.f32.mrb[0].mxu0
        %816 = vmatprep.mubr.f32.mxu0 0.0
        %817 = vmatmul.mubr.f32.gmra.mrb[0].mxu0 %v693
        %v818 = vpop.f32.mrb[0].mxu0
        %v819 = vadd.f32 %v672, %v818
        %v820 = vpop.f32.mrb[0].mxu0
        %821 = vmatprep.mubr.f32.mxu0 0.0
        %822 = vmatmul.mubr.f32.gmra.mrb[0].mxu0 %v696
        %v823 = vpop.f32.mrb[0].mxu0
        %v824 = vadd.f32 %v672, %v823
        %v825 = vpop.f32.mrb[0].mxu0
        %826 = vmatprep.mubr.f32.mxu0 0.0
        %827 = vmatmul.mubr.f32.gmra.mrb[0].mxu0 %v699
        %v828 = vpop.f32.mrb[0].mxu0
        %v829 = vadd.f32 %v672, %v828
        %v830 = vpop.f32.mrb[0].mxu0
        %831 = vmatprep.mubr.f32.mxu0 0.0
        %832 = vmatmul.mubr.f32.gmra.mrb[0].mxu0 %v702
        %v833 = vpop.f32.mrb[0].mxu0
        %v834 = vadd.f32 %v672, %v833
        %v835 = vpop.f32.mrb[0].mxu0
        %836 = vmatprep.mubr.f32.mxu0 0.0
        %837 = vmatmul.mubr.f32.gmra.mrb[0].mxu0 %v705
        %v838 = vpop.f32.mrb[0].mxu0
        %v839 = vadd.f32 %v672, %v838
        %v840 = vpop.f32.mrb[0].mxu0
        %841 = vmatprep.mubr.f32.mxu0 0.0
        %842 = vmatmul.mubr.f32.gmra.mrb[0].mxu0 %v708
        %v843 = vpop.f32.mrb[0].mxu0
        %v844 = vadd.f32 %v672, %v843
        %v845 = vpop.f32.mrb[0].mxu0
        %846 = vmatprep.mubr.f32.mxu0 0.0
        %847 = vmatmul.mubr.f32.gmra.mrb[0].mxu0 %v711
        %v848 = vpop.f32.mrb[0].mxu0
        %v849 = vadd.f32 %v672, %v848
        %v850 = vpop.f32.mrb[0].mxu0
        %851 = vmatprep.mubr.f32.mxu0 0.0
        %852 = vmatmul.mubr.f32.gmra.mrb[0].mxu0 %v714
        %v853 = vpop.f32.mrb[0].mxu0
        %v854 = vadd.f32 %v672, %v853
        %v855 = vpop.f32.mrb[0].mxu0
        %856 = vmatprep.mubr.f32.mxu0 0.0
        %857 = vmatmul.mubr.f32.gmra.mrb[0].mxu0 %v717
        %v858 = vpop.f32.mrb[0].mxu0
        %v859 = vadd.f32 %v672, %v858
        %v860 = vpop.f32.mrb[0].mxu0
        %861 = vmatprep.mubr.f32.mxu0 0.0
        %862 = vmatmul.mubr.f32.gmra.mrb[0].mxu0 %v720
        %v863 = vpop.f32.mrb[0].mxu0
        %v864 = vadd.f32 %v672, %v863
        %v865 = vpop.f32.mrb[0].mxu0
        %866 = vdwg.mxu0
        %v867 = vmax.f32 %v789, 0.0
        %v868 = vmax.f32 %v794, 0.0
        %v869 = vmax.f32 %v799, 0.0
        %v870 = vmax.f32 %v804, 0.0
        %v871 = vmax.f32 %v809, 0.0
        %v872 = vmax.f32 %v814, 0.0
        %v873 = vmax.f32 %v819, 0.0
        %v874 = vmax.f32 %v824, 0.0
        %v875 = vmax.f32 %v829, 0.0
        %v876 = vmax.f32 %v834, 0.0
        %v877 = vmax.f32 %v839, 0.0
        %v878 = vmax.f32 %v844, 0.0
        %v879 = vmax.f32 %v849, 0.0
        %v880 = vmax.f32 %v854, 0.0
        %v881 = vmax.f32 %v859, 0.0
        %v882 = vmax.f32 %v864, 0.0
        %vm883 = vcmask 130048
        %884 = vst.msk [vmem:[%s301] sm:$0xff] %vm883, %v867
        %885 = vst.msk [vmem:[%s301 + $0x8] sm:$0xff] %vm883, %v868
        %886 = vst.msk [vmem:[%s301 + $0x10] sm:$0xff] %vm883, %v869
        %887 = vst.msk [vmem:[%s301 + $0x18] sm:$0xff] %vm883, %v870
        %888 = vst.msk [vmem:[%s301 + $0x20] sm:$0xff] %vm883, %v871
        %889 = vst.msk [vmem:[%s301 + $0x28] sm:$0xff] %vm883, %v872
        %890 = vst.msk [vmem:[%s301 + $0x30] sm:$0xff] %vm883, %v873
        %891 = vst.msk [vmem:[%s301 + $0x38] sm:$0xff] %vm883, %v874
        %892 = vst.msk [vmem:[%s301 + $0x40] sm:$0xff] %vm883, %v875
        %893 = vst.msk [vmem:[%s301 + $0x48] sm:$0xff] %vm883, %v876
        %894 = vst.msk [vmem:[%s301 + $0x50] sm:$0xff] %vm883, %v877
        %895 = vst.msk [vmem:[%s301 + $0x58] sm:$0xff] %vm883, %v878
        %896 = vst.msk [vmem:[%s301 + $0x60] sm:$0xff] %vm883, %v879
        %897 = vst.msk [vmem:[%s301 + $0x68] sm:$0xff] %vm883, %v880
        %898 = vst.msk [vmem:[%s301 + $0x70] sm:$0xff] %vm883, %v881
        %899 = vst.msk [vmem:[%s301 + $0x78] sm:$0xff] %vm883, %v882
      $region48: #{gin2_forward.3} parent=39 // pred_fallthru
        _
      %s900 = smul.u32 16, %s20
      %p901 = scmp.lt.s32.totalorder %s900, 31
      %s902 = scalar_select %p901, %s900, 31
      %s903 = smul.addr %s902, 8
      %s904 = scalar_lea.vmem %s5, %s903
      // Predicated region
      $region49: #{gin2_forward.3} parent=39 // pred_check
        %p905 = pneg %p168
      $region50: #{gin2_forward.3} parent=39 // pred_check_branch
        %907 = sbr.rel (%p905) target = $region52
      $region51: #{gin2_forward.3} parent=39 // pred_region
        %s908 = smul.u32 16, %s20
      $region52: #{gin2_forward.3} parent=39 // pred_fallthru
        _
    $region40: #{gin2_forward.3} parent=5 // pred_fallthru
      _
    %p909 = scmp.le.s32.totalorder 2, %s11
    // Predicated region
    $region53: #{gin2_forward.3} parent=5 // pred_check
      %p910 = pneg %p909
    $region54: #{gin2_forward.3} parent=5 // pred_check_branch
      %912 = sbr.rel (%p910) target = $region56
    $region55: #{gin2_forward.3} parent=5 // pred_region
      %s913 = ssub.s32 %s11, 2
      // Predicated region
      $region57: #{gin2_forward.3} parent=55 // pred_check
        %p914 = pneg %p174
      $region58: #{gin2_forward.3} parent=55 // pred_check_branch
        %916 = sbr.rel (%p914) target = $region60
      $region59: #{gin2_forward.3} parent=55 // pred_region
        %s917 = smul.u32 16, %s22
        %p918 = scmp.lt.s32.totalorder %s917, 31
        %s919 = scalar_select %p918, %s917, 31
        %s920 = smul.addr %s919, 8
        %s921 = scalar_lea.vmem %s5, %s920
      $region60: #{gin2_forward.3} parent=55 // pred_fallthru
        _
    $region56: #{gin2_forward.3} parent=5 // pred_fallthru
      _
  $region6: #{gin2_forward.3} parent=0 // loop_footer
    %s15 = sadd.s32 1, %s11
  $region7: #{gin2_forward.3} parent=0 // loop_footer_branch
    %10 = sbr.rel target = $region3
  $region8: #{gin2_forward.3} parent=0 // loop_exit
    _

// kernel: gin2_forward.5
$region0: #{gin2_forward.5}
  #allocation0 [shape = 'u32[]', space=smem, size = 0x4, offset = 0x4, fixed_abs, tag = 'smem constant byte address 0x4 - core index']
  #allocation1 [shape = 'u32[144,128]{1,0:T(1,128)}', space=vmem, size = 0x12000, scoped, tag = 'internal scratch']
  %s0 = inlined_call_operand.vmem [shape: f32[128,16], index: 0, kind: input, shape index: {}]
  %s1 = inlined_call_operand.vmem [shape: f32[128,16], index: 1, kind: input, shape index: {}]
  %s2 = inlined_call_operand.vmem [shape: f32[16,16], index: 2, kind: input, shape index: {}]
  %s3 = inlined_call_operand.vmem [shape: f32[16,16], index: 3, kind: input, shape index: {}]
  %s4 = inlined_call_operand.vmem [shape: f32[1,16], index: 4, kind: input, shape index: {}]
  %s5 = inlined_call_operand.vmem [shape: f32[16,128], index: 5, kind: input, shape index: {}]
  %s6 = inlined_call_operand.vmem [shape: f32[1,128], index: 6, kind: input, shape index: {}]
  %s7 = inlined_call_operand.vmem [shape: f32[128,128], index: 7, kind: output, shape index: {}]
  %s8 = sld [smem:[#allocation0]]
  $region38: #{gin2_forward.5} parent=0
    _
  %s10 = ssub.s32 1, %s8
  %s11 = scalar_select 0, %s10, %s8
  // Predicated region
  $region2: #{gin2_forward.5} parent=0 // pred_check
    _
  $region3: #{gin2_forward.5} parent=0 // pred_check_branch
    %13 = sbr.rel (0) target = $region5
  $region4: #{gin2_forward.5} parent=0 // pred_region
    _
  $region5: #{gin2_forward.5} parent=0 // pred_fallthru
    _
  // Predicated region
  $region6: #{gin2_forward.5} parent=0 // pred_check
    _
  $region7: #{gin2_forward.5} parent=0 // pred_check_branch
    %15 = sbr.rel (0) target = $region9
  $region8: #{gin2_forward.5} parent=0 // pred_region
    _
  $region9: #{gin2_forward.5} parent=0 // pred_fallthru
    _
  // Predicated region
  $region10: #{gin2_forward.5} parent=0 // pred_check
    _
  $region11: #{gin2_forward.5} parent=0 // pred_check_branch
    %17 = sbr.rel (0) target = $region13
  $region12: #{gin2_forward.5} parent=0 // pred_region
    _
  $region13: #{gin2_forward.5} parent=0 // pred_fallthru
    _
  // Predicated region
  $region14: #{gin2_forward.5} parent=0 // pred_check
    _
  $region15: #{gin2_forward.5} parent=0 // pred_check_branch
    %19 = sbr.rel (0) target = $region17
  $region16: #{gin2_forward.5} parent=0 // pred_region
    _
  $region17: #{gin2_forward.5} parent=0 // pred_fallthru
    _
  // Predicated region
  $region18: #{gin2_forward.5} parent=0 // pred_check
    _
  $region19: #{gin2_forward.5} parent=0 // pred_check_branch
    %21 = sbr.rel (0) target = $region21
  $region20: #{gin2_forward.5} parent=0 // pred_region
    _
  $region21: #{gin2_forward.5} parent=0 // pred_fallthru
    _
  // Predicated region
  $region22: #{gin2_forward.5} parent=0 // pred_check
    _
  $region23: #{gin2_forward.5} parent=0 // pred_check_branch
    %23 = sbr.rel (0) target = $region25
  $region24: #{gin2_forward.5} parent=0 // pred_region
    _
  $region25: #{gin2_forward.5} parent=0 // pred_fallthru
    _
  // Predicated region
  $region26: #{gin2_forward.5} parent=0 // pred_check
    _
  $region27: #{gin2_forward.5} parent=0 // pred_check_branch
    %25 = sbr.rel (0) target = $region29
  $region28: #{gin2_forward.5} parent=0 // pred_region
    _
  $region29: #{gin2_forward.5} parent=0 // pred_fallthru
    _
  %v26 = vld [vmem:[%s0] sm:$0xff]
  %v27 = vld [vmem:[%s0 + $0x8] sm:$0xff]
  %v28 = vld [vmem:[%s0 + $0x10] sm:$0xff]
  %v29 = vld [vmem:[%s0 + $0x18] sm:$0xff]
  %v30 = vld [vmem:[%s0 + $0x20] sm:$0xff]
  %v31 = vld [vmem:[%s0 + $0x28] sm:$0xff]
  %v32 = vld [vmem:[%s0 + $0x30] sm:$0xff]
  %v33 = vld [vmem:[%s0 + $0x38] sm:$0xff]
  %v34 = vld [vmem:[%s0 + $0x40] sm:$0xff]
  %v35 = vld [vmem:[%s0 + $0x48] sm:$0xff]
  %v36 = vld [vmem:[%s0 + $0x50] sm:$0xff]
  %v37 = vld [vmem:[%s0 + $0x58] sm:$0xff]
  %v38 = vld [vmem:[%s0 + $0x60] sm:$0xff]
  %v39 = vld [vmem:[%s0 + $0x68] sm:$0xff]
  %v40 = vld [vmem:[%s0 + $0x70] sm:$0xff]
  %v41 = vld [vmem:[%s0 + $0x78] sm:$0xff]
  %v42 = vld [vmem:[%s2] sm:$0xff]
  %v43 = vld [vmem:[%s2 + $0x8] sm:$0xff]
  %v44 = vld [vmem:[%s1] sm:$0xff]
  %v45 = vld [vmem:[%s1 + $0x8] sm:$0xff]
  %v46 = vld [vmem:[%s1 + $0x10] sm:$0xff]
  %v47 = vld [vmem:[%s1 + $0x18] sm:$0xff]
  %v48 = vld [vmem:[%s1 + $0x20] sm:$0xff]
  %v49 = vld [vmem:[%s1 + $0x28] sm:$0xff]
  %v50 = vld [vmem:[%s1 + $0x30] sm:$0xff]
  %v51 = vld [vmem:[%s1 + $0x38] sm:$0xff]
  %v52 = vld [vmem:[%s1 + $0x40] sm:$0xff]
  %v53 = vld [vmem:[%s1 + $0x48] sm:$0xff]
  %v54 = vld [vmem:[%s1 + $0x50] sm:$0xff]
  %v55 = vld [vmem:[%s1 + $0x58] sm:$0xff]
  %v56 = vld [vmem:[%s1 + $0x60] sm:$0xff]
  %v57 = vld [vmem:[%s1 + $0x68] sm:$0xff]
  %v58 = vld [vmem:[%s1 + $0x70] sm:$0xff]
  %v59 = vld [vmem:[%s1 + $0x78] sm:$0xff]
  %v60 = vld [vmem:[%s3] sm:$0xff]
  %v61 = vld [vmem:[%s3 + $0x8] sm:$0xff]
  %vm62 = vcmask 130048
  %v64 = vsel %vm62, %v44, 0
  %v67 = vsel %vm62, %v45, 0
  %v70 = vsel %vm62, %v46, 0
  %v73 = vsel %vm62, %v47, 0
  %v76 = vsel %vm62, %v48, 0
  %v79 = vsel %vm62, %v49, 0
  %v82 = vsel %vm62, %v50, 0
  %v85 = vsel %vm62, %v51, 0
  %v88 = vsel %vm62, %v52, 0
  %v91 = vsel %vm62, %v53, 0
  %v94 = vsel %vm62, %v54, 0
  %v97 = vsel %vm62, %v55, 0
  %v100 = vsel %vm62, %v56, 0
  %v103 = vsel %vm62, %v57, 0
  %v106 = vsel %vm62, %v58, 0
  %v109 = vsel %vm62, %v59, 0
  %111 = vmatprep.subr.mxu0 0.0
  %112 = vmatpush1.msra.mxu0 %v60
  %113 = vmatprep.subr.mxu0 0.0
  %114 = vmatpush1.msra.mxu0 %v61
  %115 = vmatprep.subr.mxu0 0.0
  %116 = vmatpush1.msra.mxu0 0.0
  %117 = vmatprep.subr.mxu0 0.0
  %118 = vmatpush1.msra.mxu0 0.0
  %119 = vmatprep.subr.mxu0 0.0
  %120 = vmatpush1.msra.mxu0 0.0
  %121 = vmatprep.subr.mxu0 0.0
  %122 = vmatpush1.msra.mxu0 0.0
  %123 = vmatprep.subr.mxu0 0.0
  %124 = vmatpush1.msra.mxu0 0.0
  %125 = vmatprep.subr.mxu0 0.0
  %126 = vmatpush1.msra.mxu0 0.0
  %127 = vmatprep.subr.mxu0 0.0
  %128 = vmatpush1.msra.mxu0 0.0
  %129 = vmatprep.subr.mxu0 0.0
  %130 = vmatpush1.msra.mxu0 0.0
  %131 = vmatprep.subr.mxu0 0.0
  %132 = vmatpush1.msra.mxu0 0.0
  %133 = vmatprep.subr.mxu0 0.0
  %134 = vmatpush1.msra.mxu0 0.0
  %135 = vmatprep.subr.mxu0 0.0
  %136 = vmatpush1.msra.mxu0 0.0
  %137 = vmatprep.subr.mxu0 0.0
  %138 = vmatpush1.msra.mxu0 0.0
  %139 = vmatprep.subr.mxu0 0.0
  %140 = vmatpush1.msra.mxu0 0.0
  %141 = vmatprep.subr.mxu0 0.0
  %142 = vmatpush1.msra.mxu0 0.0
  %143 = vmatprep.subr.mxu0 0.0
  %144 = vmatpush1.msra.mxu0 0.0
  %145 = vmatprep.subr.mxu0 0.0
  %146 = vmatpush1.msra.mxu0 0.0
  %147 = vmatprep.subr.mxu0 0.0
  %148 = vmatpush1.msra.mxu0 0.0
  %149 = vmatprep.subr.mxu0 0.0
  %150 = vmatpush1.msra.mxu0 0.0
  %151 = vmatprep.subr.mxu0 0.0
  %152 = vmatpush1.msra.mxu0 0.0
  %153 = vmatprep.subr.mxu0 0.0
  %154 = vmatpush1.msra.mxu0 0.0
  %155 = vmatprep.subr.mxu0 0.0
  %156 = vmatpush1.msra.mxu0 0.0
  %157 = vmatprep.subr.mxu0 0.0
  %158 = vmatpush1.msra.mxu0 0.0
  %159 = vmatprep.subr.mxu0 0.0
  %160 = vmatpush1.msra.mxu0 0.0
  %161 = vmatprep.subr.mxu0 0.0
  %162 = vmatpush1.msra.mxu0 0.0
  %163 = vmatprep.subr.mxu0 0.0
  %164 = vmatpush1.msra.mxu0 0.0
  %165 = vmatprep.subr.mxu0 0.0
  %166 = vmatpush1.msra.mxu0 0.0
  %167 = vmatprep.subr.mxu0 0.0
  %168 = vmatpush1.msra.mxu0 0.0
  %169 = vmatprep.subr.mxu0 0.0
  %170 = vmatpush1.msra.mxu0 0.0
  %171 = vmatprep.subr.mxu0 0.0
  %172 = vmatpush1.msra.mxu0 0.0
  %173 = vmatprep.subr.mxu0 0.0
  %174 = vmatpush1.msra.mxu0 0.0
  %175 = vmatprep.mubr.f32.mxu0 0.0
  %176 = vmatmul.mubr.f32.gmra.mrb[0].mxu0 %v64
  %v177 = vpop.f32.mrb[0].mxu0
  %v178 = vadd.f32 0.0, %v177
  %v179 = vpop.f32.mrb[0].mxu0
  %180 = vmatprep.mubr.f32.mxu0 0.0
  %181 = vmatmul.mubr.f32.gmra.mrb[0].mxu0 %v67
  %v182 = vpop.f32.mrb[0].mxu0
  %v183 = vadd.f32 0.0, %v182
  %v184 = vpop.f32.mrb[0].mxu0
  %185 = vmatprep.mubr.f32.mxu0 0.0
  %186 = vmatmul.mubr.f32.gmra.mrb[0].mxu0 %v70
  %v187 = vpop.f32.mrb[0].mxu0
  %v188 = vadd.f32 0.0, %v187
  %v189 = vpop.f32.mrb[0].mxu0
  %190 = vmatprep.mubr.f32.mxu0 0.0
  %191 = vmatmul.mubr.f32.gmra.mrb[0].mxu0 %v73
  %v192 = vpop.f32.mrb[0].mxu0
  %v193 = vadd.f32 0.0, %v192
  %v194 = vpop.f32.mrb[0].mxu0
  %195 = vmatprep.mubr.f32.mxu0 0.0
  %196 = vmatmul.mubr.f32.gmra.mrb[0].mxu0 %v76
  %v197 = vpop.f32.mrb[0].mxu0
  %v198 = vadd.f32 0.0, %v197
  %v199 = vpop.f32.mrb[0].mxu0
  %200 = vmatprep.mubr.f32.mxu0 0.0
  %201 = vmatmul.mubr.f32.gmra.mrb[0].mxu0 %v79
  %v202 = vpop.f32.mrb[0].mxu0
  %v203 = vadd.f32 0.0, %v202
  %v204 = vpop.f32.mrb[0].mxu0
  %205 = vmatprep.mubr.f32.mxu0 0.0
  %206 = vmatmul.mubr.f32.gmra.mrb[0].mxu0 %v82
  %v207 = vpop.f32.mrb[0].mxu0
  %v208 = vadd.f32 0.0, %v207
  %v209 = vpop.f32.mrb[0].mxu0
  %210 = vmatprep.mubr.f32.mxu0 0.0
  %211 = vmatmul.mubr.f32.gmra.mrb[0].mxu0 %v85
  %v212 = vpop.f32.mrb[0].mxu0
  %v213 = vadd.f32 0.0, %v212
  %v214 = vpop.f32.mrb[0].mxu0
  %215 = vmatprep.mubr.f32.mxu0 0.0
  %216 = vmatmul.mubr.f32.gmra.mrb[0].mxu0 %v88
  %v217 = vpop.f32.mrb[0].mxu0
  %v218 = vadd.f32 0.0, %v217
  %v219 = vpop.f32.mrb[0].mxu0
  %220 = vmatprep.mubr.f32.mxu0 0.0
  %221 = vmatmul.mubr.f32.gmra.mrb[0].mxu0 %v91
  %v222 = vpop.f32.mrb[0].mxu0
  %v223 = vadd.f32 0.0, %v222
  %v224 = vpop.f32.mrb[0].mxu0
  %225 = vmatprep.mubr.f32.mxu0 0.0
  %226 = vmatmul.mubr.f32.gmra.mrb[0].mxu0 %v94
  %v227 = vpop.f32.mrb[0].mxu0
  %v228 = vadd.f32 0.0, %v227
  %v229 = vpop.f32.mrb[0].mxu0
  %230 = vmatprep.mubr.f32.mxu0 0.0
  %231 = vmatmul.mubr.f32.gmra.mrb[0].mxu0 %v97
  %v232 = vpop.f32.mrb[0].mxu0
  %v233 = vadd.f32 0.0, %v232
  %v234 = vpop.f32.mrb[0].mxu0
  %235 = vmatprep.mubr.f32.mxu0 0.0
  %236 = vmatmul.mubr.f32.gmra.mrb[0].mxu0 %v100
  %v237 = vpop.f32.mrb[0].mxu0
  %v238 = vadd.f32 0.0, %v237
  %v239 = vpop.f32.mrb[0].mxu0
  %240 = vmatprep.mubr.f32.mxu0 0.0
  %241 = vmatmul.mubr.f32.gmra.mrb[0].mxu0 %v103
  %v242 = vpop.f32.mrb[0].mxu0
  %v243 = vadd.f32 0.0, %v242
  %v244 = vpop.f32.mrb[0].mxu0
  %245 = vmatprep.mubr.f32.mxu0 0.0
  %246 = vmatmul.mubr.f32.gmra.mrb[0].mxu0 %v106
  %v247 = vpop.f32.mrb[0].mxu0
  %v248 = vadd.f32 0.0, %v247
  %v249 = vpop.f32.mrb[0].mxu0
  %250 = vmatprep.mubr.f32.mxu0 0.0
  %251 = vmatmul.mubr.f32.gmra.mrb[0].mxu0 %v109
  %v252 = vpop.f32.mrb[0].mxu0
  %v253 = vadd.f32 0.0, %v252
  %v254 = vpop.f32.mrb[0].mxu0
  %255 = vdwg.mxu0
  %v257 = vsel %vm62, %v26, 0
  %v260 = vsel %vm62, %v27, 0
  %v263 = vsel %vm62, %v28, 0
  %v266 = vsel %vm62, %v29, 0
  %v269 = vsel %vm62, %v30, 0
  %v272 = vsel %vm62, %v31, 0
  %v275 = vsel %vm62, %v32, 0
  %v278 = vsel %vm62, %v33, 0
  %v281 = vsel %vm62, %v34, 0
  %v284 = vsel %vm62, %v35, 0
  %v287 = vsel %vm62, %v36, 0
  %v290 = vsel %vm62, %v37, 0
  %v293 = vsel %vm62, %v38, 0
  %v296 = vsel %vm62, %v39, 0
  %v299 = vsel %vm62, %v40, 0
  %v302 = vsel %vm62, %v41, 0
  %304 = vmatprep.subr.mxu0 0.0
  %305 = vmatpush1.msra.mxu0 %v42
  %306 = vmatprep.subr.mxu0 0.0
  %307 = vmatpush1.msra.mxu0 %v43
  %308 = vmatprep.subr.mxu0 0.0
  %309 = vmatpush1.msra.mxu0 0.0
  %310 = vmatprep.subr.mxu0 0.0
  %311 = vmatpush1.msra.mxu0 0.0
  %312 = vmatprep.subr.mxu0 0.0
  %313 = vmatpush1.msra.mxu0 0.0
  %314 = vmatprep.subr.mxu0 0.0
  %315 = vmatpush1.msra.mxu0 0.0
  %316 = vmatprep.subr.mxu0 0.0
  %317 = vmatpush1.msra.mxu0 0.0
  %318 = vmatprep.subr.mxu0 0.0
  %319 = vmatpush1.msra.mxu0 0.0
  %320 = vmatprep.subr.mxu0 0.0
  %321 = vmatpush1.msra.mxu0 0.0
  %322 = vmatprep.subr.mxu0 0.0
  %323 = vmatpush1.msra.mxu0 0.0
  %324 = vmatprep.subr.mxu0 0.0
  %325 = vmatpush1.msra.mxu0 0.0
  %326 = vmatprep.subr.mxu0 0.0
  %327 = vmatpush1.msra.mxu0 0.0
  %328 = vmatprep.subr.mxu0 0.0
  %329 = vmatpush1.msra.mxu0 0.0
  %330 = vmatprep.subr.mxu0 0.0
  %331 = vmatpush1.msra.mxu0 0.0
  %332 = vmatprep.subr.mxu0 0.0
  %333 = vmatpush1.msra.mxu0 0.0
  %334 = vmatprep.subr.mxu0 0.0
  %335 = vmatpush1.msra.mxu0 0.0
  %336 = vmatprep.subr.mxu0 0.0
  %337 = vmatpush1.msra.mxu0 0.0
  %338 = vmatprep.subr.mxu0 0.0
  %339 = vmatpush1.msra.mxu0 0.0
  %340 = vmatprep.subr.mxu0 0.0
  %341 = vmatpush1.msra.mxu0 0.0
  %342 = vmatprep.subr.mxu0 0.0
  %343 = vmatpush1.msra.mxu0 0.0
  %344 = vmatprep.subr.mxu0 0.0
  %345 = vmatpush1.msra.mxu0 0.0
  %346 = vmatprep.subr.mxu0 0.0
  %347 = vmatpush1.msra.mxu0 0.0
  %348 = vmatprep.subr.mxu0 0.0
  %349 = vmatpush1.msra.mxu0 0.0
  %350 = vmatprep.subr.mxu0 0.0
  %351 = vmatpush1.msra.mxu0 0.0
  %352 = vmatprep.subr.mxu0 0.0
  %353 = vmatpush1.msra.mxu0 0.0
  %354 = vmatprep.subr.mxu0 0.0
  %355 = vmatpush1.msra.mxu0 0.0
  %356 = vmatprep.subr.mxu0 0.0
  %357 = vmatpush1.msra.mxu0 0.0
  %358 = vmatprep.subr.mxu0 0.0
  %359 = vmatpush1.msra.mxu0 0.0
  %360 = vmatprep.subr.mxu0 0.0
  %361 = vmatpush1.msra.mxu0 0.0
  %362 = vmatprep.subr.mxu0 0.0
  %363 = vmatpush1.msra.mxu0 0.0
  %364 = vmatprep.subr.mxu0 0.0
  %365 = vmatpush1.msra.mxu0 0.0
  %366 = vmatprep.subr.mxu0 0.0
  %367 = vmatpush1.msra.mxu0 0.0
  %368 = vmatprep.mubr.f32.mxu0 0.0
  %369 = vmatmul.mubr.f32.gmra.mrb[0].mxu0 %v257
  %v370 = vpop.f32.mrb[0].mxu0
  %v371 = vadd.f32 %v178, %v370
  %v372 = vpop.f32.mrb[0].mxu0
  %373 = vmatprep.mubr.f32.mxu0 0.0
  %374 = vmatmul.mubr.f32.gmra.mrb[0].mxu0 %v260
  %v375 = vpop.f32.mrb[0].mxu0
  %v376 = vadd.f32 %v183, %v375
  %v377 = vpop.f32.mrb[0].mxu0
  %378 = vmatprep.mubr.f32.mxu0 0.0
  %379 = vmatmul.mubr.f32.gmra.mrb[0].mxu0 %v263
  %v380 = vpop.f32.mrb[0].mxu0
  %v381 = vadd.f32 %v188, %v380
  %v382 = vpop.f32.mrb[0].mxu0
  %383 = vmatprep.mubr.f32.mxu0 0.0
  %384 = vmatmul.mubr.f32.gmra.mrb[0].mxu0 %v266
  %v385 = vpop.f32.mrb[0].mxu0
  %v386 = vadd.f32 %v193, %v385
  %v387 = vpop.f32.mrb[0].mxu0
  %388 = vmatprep.mubr.f32.mxu0 0.0
  %389 = vmatmul.mubr.f32.gmra.mrb[0].mxu0 %v269
  %v390 = vpop.f32.mrb[0].mxu0
  %v391 = vadd.f32 %v198, %v390
  %v392 = vpop.f32.mrb[0].mxu0
  %393 = vmatprep.mubr.f32.mxu0 0.0
  %394 = vmatmul.mubr.f32.gmra.mrb[0].mxu0 %v272
  %v395 = vpop.f32.mrb[0].mxu0
  %v396 = vadd.f32 %v203, %v395
  %v397 = vpop.f32.mrb[0].mxu0
  %398 = vmatprep.mubr.f32.mxu0 0.0
  %399 = vmatmul.mubr.f32.gmra.mrb[0].mxu0 %v275
  %v400 = vpop.f32.mrb[0].mxu0
  %v401 = vadd.f32 %v208, %v400
  %v402 = vpop.f32.mrb[0].mxu0
  %403 = vmatprep.mubr.f32.mxu0 0.0
  %404 = vmatmul.mubr.f32.gmra.mrb[0].mxu0 %v278
  %v405 = vpop.f32.mrb[0].mxu0
  %v406 = vadd.f32 %v213, %v405
  %v407 = vpop.f32.mrb[0].mxu0
  %408 = vmatprep.mubr.f32.mxu0 0.0
  %409 = vmatmul.mubr.f32.gmra.mrb[0].mxu0 %v281
  %v410 = vpop.f32.mrb[0].mxu0
  %v411 = vadd.f32 %v218, %v410
  %v412 = vpop.f32.mrb[0].mxu0
  %413 = vmatprep.mubr.f32.mxu0 0.0
  %414 = vmatmul.mubr.f32.gmra.mrb[0].mxu0 %v284
  %v415 = vpop.f32.mrb[0].mxu0
  %v416 = vadd.f32 %v223, %v415
  %v417 = vpop.f32.mrb[0].mxu0
  %418 = vmatprep.mubr.f32.mxu0 0.0
  %419 = vmatmul.mubr.f32.gmra.mrb[0].mxu0 %v287
  %v420 = vpop.f32.mrb[0].mxu0
  %v421 = vadd.f32 %v228, %v420
  %v422 = vpop.f32.mrb[0].mxu0
  %423 = vmatprep.mubr.f32.mxu0 0.0
  %424 = vmatmul.mubr.f32.gmra.mrb[0].mxu0 %v290
  %v425 = vpop.f32.mrb[0].mxu0
  %v426 = vadd.f32 %v233, %v425
  %v427 = vpop.f32.mrb[0].mxu0
  %428 = vmatprep.mubr.f32.mxu0 0.0
  %429 = vmatmul.mubr.f32.gmra.mrb[0].mxu0 %v293
  %v430 = vpop.f32.mrb[0].mxu0
  %v431 = vadd.f32 %v238, %v430
  %v432 = vpop.f32.mrb[0].mxu0
  %433 = vmatprep.mubr.f32.mxu0 0.0
  %434 = vmatmul.mubr.f32.gmra.mrb[0].mxu0 %v296
  %v435 = vpop.f32.mrb[0].mxu0
  %v436 = vadd.f32 %v243, %v435
  %v437 = vpop.f32.mrb[0].mxu0
  %438 = vmatprep.mubr.f32.mxu0 0.0
  %439 = vmatmul.mubr.f32.gmra.mrb[0].mxu0 %v299
  %v440 = vpop.f32.mrb[0].mxu0
  %v441 = vadd.f32 %v248, %v440
  %v442 = vpop.f32.mrb[0].mxu0
  %443 = vmatprep.mubr.f32.mxu0 0.0
  %444 = vmatmul.mubr.f32.gmra.mrb[0].mxu0 %v302
  %v445 = vpop.f32.mrb[0].mxu0
  %v446 = vadd.f32 %v253, %v445
  %v447 = vpop.f32.mrb[0].mxu0
  %448 = vdwg.mxu0
  %v449 = vld [vmem:[%s4] sm:$0x1]
  %v451 = vlaneseq
  %v452 = vshrl.u32 %v451, 7
  %v453 = vsub.s32 0, %v452
  %v454 = vrot.slane %v449, %v453
  %v456 = vadd.f32 %v371, %v454
  %v457 = vadd.f32 %v376, %v454
  %v458 = vadd.f32 %v381, %v454
  %v459 = vadd.f32 %v386, %v454
  %v460 = vadd.f32 %v391, %v454
  %v461 = vadd.f32 %v396, %v454
  %v462 = vadd.f32 %v401, %v454
  %v463 = vadd.f32 %v406, %v454
  %v464 = vadd.f32 %v411, %v454
  %v465 = vadd.f32 %v416, %v454
  %v466 = vadd.f32 %v421, %v454
  %v467 = vadd.f32 %v426, %v454
  %v468 = vadd.f32 %v431, %v454
  %v469 = vadd.f32 %v436, %v454
  %v470 = vadd.f32 %v441, %v454
  %v471 = vadd.f32 %v446, %v454
  %v472 = vmax.f32 %v456, 0.0
  %v473 = vmax.f32 %v457, 0.0
  %v474 = vmax.f32 %v458, 0.0
  %v475 = vmax.f32 %v459, 0.0
  %v476 = vmax.f32 %v460, 0.0
  %v477 = vmax.f32 %v461, 0.0
  %v478 = vmax.f32 %v462, 0.0
  %v479 = vmax.f32 %v463, 0.0
  %v480 = vmax.f32 %v464, 0.0
  %v481 = vmax.f32 %v465, 0.0
  %v482 = vmax.f32 %v466, 0.0
  %v483 = vmax.f32 %v467, 0.0
  %v484 = vmax.f32 %v468, 0.0
  %v485 = vmax.f32 %v469, 0.0
  %v486 = vmax.f32 %v470, 0.0
  %v487 = vmax.f32 %v471, 0.0
  %v488 = vld [vmem:[%s5] sm:$0xff]
  %v489 = vld [vmem:[%s5 + $0x8] sm:$0xff]
  %v490 = vld [vmem:[%s6] sm:$0x1]
  %v492 = vlaneseq
  %v493 = vshrl.u32 %v492, 7
  %v494 = vsub.s32 0, %v493
  %v495 = vrot.slane %v490, %v494
  %v498 = vsel %vm62, %v472, 0
  %v501 = vsel %vm62, %v473, 0
  %v504 = vsel %vm62, %v474, 0
  %v507 = vsel %vm62, %v475, 0
  %v510 = vsel %vm62, %v476, 0
  %v513 = vsel %vm62, %v477, 0
  %v516 = vsel %vm62, %v478, 0
  %v519 = vsel %vm62, %v479, 0
  %v522 = vsel %vm62, %v480, 0
  %v525 = vsel %vm62, %v481, 0
  %v528 = vsel %vm62, %v482, 0
  %v531 = vsel %vm62, %v483, 0
  %v534 = vsel %vm62, %v484, 0
  %v537 = vsel %vm62, %v485, 0
  %v540 = vsel %vm62, %v486, 0
  %v543 = vsel %vm62, %v487, 0
  %545 = vmatprep.subr.mxu0 0.0
  %546 = vmatpush1.msra.mxu0 %v488
  %547 = vmatprep.subr.mxu0 0.0
  %548 = vmatpush1.msra.mxu0 %v489
  %549 = vmatprep.subr.mxu0 0.0
  %550 = vmatpush1.msra.mxu0 0.0
  %551 = vmatprep.subr.mxu0 0.0
  %552 = vmatpush1.msra.mxu0 0.0
  %553 = vmatprep.subr.mxu0 0.0
  %554 = vmatpush1.msra.mxu0 0.0
  %555 = vmatprep.subr.mxu0 0.0
  %556 = vmatpush1.msra.mxu0 0.0
  %557 = vmatprep.subr.mxu0 0.0
  %558 = vmatpush1.msra.mxu0 0.0
  %559 = vmatprep.subr.mxu0 0.0
  %560 = vmatpush1.msra.mxu0 0.0
  %561 = vmatprep.subr.mxu0 0.0
  %562 = vmatpush1.msra.mxu0 0.0
  %563 = vmatprep.subr.mxu0 0.0
  %564 = vmatpush1.msra.mxu0 0.0
  %565 = vmatprep.subr.mxu0 0.0
  %566 = vmatpush1.msra.mxu0 0.0
  %567 = vmatprep.subr.mxu0 0.0
  %568 = vmatpush1.msra.mxu0 0.0
  %569 = vmatprep.subr.mxu0 0.0
  %570 = vmatpush1.msra.mxu0 0.0
  %571 = vmatprep.subr.mxu0 0.0
  %572 = vmatpush1.msra.mxu0 0.0
  %573 = vmatprep.subr.mxu0 0.0
  %574 = vmatpush1.msra.mxu0 0.0
  %575 = vmatprep.subr.mxu0 0.0
  %576 = vmatpush1.msra.mxu0 0.0
  %577 = vmatprep.subr.mxu0 0.0
  %578 = vmatpush1.msra.mxu0 0.0
  %579 = vmatprep.subr.mxu0 0.0
  %580 = vmatpush1.msra.mxu0 0.0
  %581 = vmatprep.subr.mxu0 0.0
  %582 = vmatpush1.msra.mxu0 0.0
  %583 = vmatprep.subr.mxu0 0.0
  %584 = vmatpush1.msra.mxu0 0.0
  %585 = vmatprep.subr.mxu0 0.0
  %586 = vmatpush1.msra.mxu0 0.0
  %587 = vmatprep.subr.mxu0 0.0
  %588 = vmatpush1.msra.mxu0 0.0
  %589 = vmatprep.subr.mxu0 0.0
  %590 = vmatpush1.msra.mxu0 0.0
  %591 = vmatprep.subr.mxu0 0.0
  %592 = vmatpush1.msra.mxu0 0.0
  %593 = vmatprep.subr.mxu0 0.0
  %594 = vmatpush1.msra.mxu0 0.0
  %595 = vmatprep.subr.mxu0 0.0
  %596 = vmatpush1.msra.mxu0 0.0
  %597 = vmatprep.subr.mxu0 0.0
  %598 = vmatpush1.msra.mxu0 0.0
  %599 = vmatprep.subr.mxu0 0.0
  %600 = vmatpush1.msra.mxu0 0.0
  %601 = vmatprep.subr.mxu0 0.0
  %602 = vmatpush1.msra.mxu0 0.0
  %603 = vmatprep.subr.mxu0 0.0
  %604 = vmatpush1.msra.mxu0 0.0
  %605 = vmatprep.subr.mxu0 0.0
  %606 = vmatpush1.msra.mxu0 0.0
  %607 = vmatprep.subr.mxu0 0.0
  %608 = vmatpush1.msra.mxu0 0.0
  %609 = vmatprep.mubr.f32.mxu0 0.0
  %610 = vmatmul.mubr.f32.gmra.mrb[0].mxu0 %v498
  %v611 = vpop.f32.mrb[0].mxu0
  %v612 = vadd.f32 %v495, %v611
  %v613 = vpop.f32.mrb[0].mxu0
  %614 = vmatprep.mubr.f32.mxu0 0.0
  %615 = vmatmul.mubr.f32.gmra.mrb[0].mxu0 %v501
  %v616 = vpop.f32.mrb[0].mxu0
  %v617 = vadd.f32 %v495, %v616
  %v618 = vpop.f32.mrb[0].mxu0
  %619 = vmatprep.mubr.f32.mxu0 0.0
  %620 = vmatmul.mubr.f32.gmra.mrb[0].mxu0 %v504
  %v621 = vpop.f32.mrb[0].mxu0
  %v622 = vadd.f32 %v495, %v621
  %v623 = vpop.f32.mrb[0].mxu0
  %624 = vmatprep.mubr.f32.mxu0 0.0
  %625 = vmatmul.mubr.f32.gmra.mrb[0].mxu0 %v507
  %v626 = vpop.f32.mrb[0].mxu0
  %v627 = vadd.f32 %v495, %v626
  %v628 = vpop.f32.mrb[0].mxu0
  %629 = vmatprep.mubr.f32.mxu0 0.0
  %630 = vmatmul.mubr.f32.gmra.mrb[0].mxu0 %v510
  %v631 = vpop.f32.mrb[0].mxu0
  %v632 = vadd.f32 %v495, %v631
  %v633 = vpop.f32.mrb[0].mxu0
  %634 = vmatprep.mubr.f32.mxu0 0.0
  %635 = vmatmul.mubr.f32.gmra.mrb[0].mxu0 %v513
  %v636 = vpop.f32.mrb[0].mxu0
  %v637 = vadd.f32 %v495, %v636
  %v638 = vpop.f32.mrb[0].mxu0
  %639 = vmatprep.mubr.f32.mxu0 0.0
  %640 = vmatmul.mubr.f32.gmra.mrb[0].mxu0 %v516
  %v641 = vpop.f32.mrb[0].mxu0
  %v642 = vadd.f32 %v495, %v641
  %v643 = vpop.f32.mrb[0].mxu0
  %644 = vmatprep.mubr.f32.mxu0 0.0
  %645 = vmatmul.mubr.f32.gmra.mrb[0].mxu0 %v519
  %v646 = vpop.f32.mrb[0].mxu0
  %v647 = vadd.f32 %v495, %v646
  %v648 = vpop.f32.mrb[0].mxu0
  %649 = vmatprep.mubr.f32.mxu0 0.0
  %650 = vmatmul.mubr.f32.gmra.mrb[0].mxu0 %v522
  %v651 = vpop.f32.mrb[0].mxu0
  %v652 = vadd.f32 %v495, %v651
  %v653 = vpop.f32.mrb[0].mxu0
  %654 = vmatprep.mubr.f32.mxu0 0.0
  %655 = vmatmul.mubr.f32.gmra.mrb[0].mxu0 %v525
  %v656 = vpop.f32.mrb[0].mxu0
  %v657 = vadd.f32 %v495, %v656
  %v658 = vpop.f32.mrb[0].mxu0
  %659 = vmatprep.mubr.f32.mxu0 0.0
  %660 = vmatmul.mubr.f32.gmra.mrb[0].mxu0 %v528
  %v661 = vpop.f32.mrb[0].mxu0
  %v662 = vadd.f32 %v495, %v661
  %v663 = vpop.f32.mrb[0].mxu0
  %664 = vmatprep.mubr.f32.mxu0 0.0
  %665 = vmatmul.mubr.f32.gmra.mrb[0].mxu0 %v531
  %v666 = vpop.f32.mrb[0].mxu0
  %v667 = vadd.f32 %v495, %v666
  %v668 = vpop.f32.mrb[0].mxu0
  %669 = vmatprep.mubr.f32.mxu0 0.0
  %670 = vmatmul.mubr.f32.gmra.mrb[0].mxu0 %v534
  %v671 = vpop.f32.mrb[0].mxu0
  %v672 = vadd.f32 %v495, %v671
  %v673 = vpop.f32.mrb[0].mxu0
  %674 = vmatprep.mubr.f32.mxu0 0.0
  %675 = vmatmul.mubr.f32.gmra.mrb[0].mxu0 %v537
  %v676 = vpop.f32.mrb[0].mxu0
  %v677 = vadd.f32 %v495, %v676
  %v678 = vpop.f32.mrb[0].mxu0
  %679 = vmatprep.mubr.f32.mxu0 0.0
  %680 = vmatmul.mubr.f32.gmra.mrb[0].mxu0 %v540
  %v681 = vpop.f32.mrb[0].mxu0
  %v682 = vadd.f32 %v495, %v681
  %v683 = vpop.f32.mrb[0].mxu0
  %684 = vmatprep.mubr.f32.mxu0 0.0
  %685 = vmatmul.mubr.f32.gmra.mrb[0].mxu0 %v543
  %v686 = vpop.f32.mrb[0].mxu0
  %v687 = vadd.f32 %v495, %v686
  %v688 = vpop.f32.mrb[0].mxu0
  %689 = vdwg.mxu0
  %690 = vmax.xlane.f32.xlu0 %v612
  %v691 = vpop.xlane.xlu0 %690
  %692 = vmax.xlane.f32.xlu0 %v617
  %v693 = vpop.xlane.xlu0 %692
  %694 = vmax.xlane.f32.xlu0 %v622
  %v695 = vpop.xlane.xlu0 %694
  %696 = vmax.xlane.f32.xlu0 %v627
  %v697 = vpop.xlane.xlu0 %696
  %698 = vmax.xlane.f32.xlu0 %v632
  %v699 = vpop.xlane.xlu0 %698
  %700 = vmax.xlane.f32.xlu0 %v637
  %v701 = vpop.xlane.xlu0 %700
  %702 = vmax.xlane.f32.xlu0 %v642
  %v703 = vpop.xlane.xlu0 %702
  %704 = vmax.xlane.f32.xlu0 %v647
  %v705 = vpop.xlane.xlu0 %704
  %706 = vmax.xlane.f32.xlu0 %v652
  %v707 = vpop.xlane.xlu0 %706
  %708 = vmax.xlane.f32.xlu0 %v657
  %v709 = vpop.xlane.xlu0 %708
  %710 = vmax.xlane.f32.xlu0 %v662
  %v711 = vpop.xlane.xlu0 %710
  %712 = vmax.xlane.f32.xlu0 %v667
  %v713 = vpop.xlane.xlu0 %712
  %714 = vmax.xlane.f32.xlu0 %v672
  %v715 = vpop.xlane.xlu0 %714
  %716 = vmax.xlane.f32.xlu0 %v677
  %v717 = vpop.xlane.xlu0 %716
  %718 = vmax.xlane.f32.xlu0 %v682
  %v719 = vpop.xlane.xlu0 %718
  %720 = vmax.xlane.f32.xlu0 %v687
  %v721 = vpop.xlane.xlu0 %720
  %v722 = vsub.f32 %v612, %v691
  %v723 = vsub.f32 %v617, %v693
  %v724 = vsub.f32 %v622, %v695
  %v725 = vsub.f32 %v627, %v697
  %v726 = vsub.f32 %v632, %v699
  %v727 = vsub.f32 %v637, %v701
  %v728 = vsub.f32 %v642, %v703
  %v729 = vsub.f32 %v647, %v705
  %v730 = vsub.f32 %v652, %v707
  %v731 = vsub.f32 %v657, %v709
  %v732 = vsub.f32 %v662, %v711
  %v733 = vsub.f32 %v667, %v713
  %v734 = vsub.f32 %v672, %v715
  %v735 = vsub.f32 %v677, %v717
  %v736 = vsub.f32 %v682, %v719
  %v737 = vsub.f32 %v687, %v721
  %v738 = vmul.f32 %v722, 1.442695
  %v739 = vpow.pop %v738
  %v740 = vmul.f32 %v723, 1.442695
  %v741 = vpow.pop %v740
  %v742 = vmul.f32 %v724, 1.442695
  %v743 = vpow.pop %v742
  %v744 = vmul.f32 %v725, 1.442695
  %v745 = vpow.pop %v744
  %v746 = vmul.f32 %v726, 1.442695
  %v747 = vpow.pop %v746
  %v748 = vmul.f32 %v727, 1.442695
  %v749 = vpow.pop %v748
  %v750 = vmul.f32 %v728, 1.442695
  %v751 = vpow.pop %v750
  %v752 = vmul.f32 %v729, 1.442695
  %v753 = vpow.pop %v752
  %v754 = vmul.f32 %v730, 1.442695
  %v755 = vpow.pop %v754
  %v756 = vmul.f32 %v731, 1.442695
  %v757 = vpow.pop %v756
  %v758 = vmul.f32 %v732, 1.442695
  %v759 = vpow.pop %v758
  %v760 = vmul.f32 %v733, 1.442695
  %v761 = vpow.pop %v760
  %v762 = vmul.f32 %v734, 1.442695
  %v763 = vpow.pop %v762
  %v764 = vmul.f32 %v735, 1.442695
  %v765 = vpow.pop %v764
  %v766 = vmul.f32 %v736, 1.442695
  %v767 = vpow.pop %v766
  %v768 = vmul.f32 %v737, 1.442695
  %v769 = vpow.pop %v768
  %770 = vadd.xlane.f32.xlu0 %v739
  %v771 = vpop.xlane.xlu0 %770
  %772 = vadd.xlane.f32.xlu0 %v741
  %v773 = vpop.xlane.xlu0 %772
  %774 = vadd.xlane.f32.xlu0 %v743
  %v775 = vpop.xlane.xlu0 %774
  %776 = vadd.xlane.f32.xlu0 %v745
  %v777 = vpop.xlane.xlu0 %776
  %778 = vadd.xlane.f32.xlu0 %v747
  %v779 = vpop.xlane.xlu0 %778
  %780 = vadd.xlane.f32.xlu0 %v749
  %v781 = vpop.xlane.xlu0 %780
  %782 = vadd.xlane.f32.xlu0 %v751
  %v783 = vpop.xlane.xlu0 %782
  %784 = vadd.xlane.f32.xlu0 %v753
  %v785 = vpop.xlane.xlu0 %784
  %786 = vadd.xlane.f32.xlu0 %v755
  %v787 = vpop.xlane.xlu0 %786
  %788 = vadd.xlane.f32.xlu0 %v757
  %v789 = vpop.xlane.xlu0 %788
  %790 = vadd.xlane.f32.xlu0 %v759
  %v791 = vpop.xlane.xlu0 %790
  %792 = vadd.xlane.f32.xlu0 %v761
  %v793 = vpop.xlane.xlu0 %792
  %794 = vadd.xlane.f32.xlu0 %v763
  %v795 = vpop.xlane.xlu0 %794
  %796 = vadd.xlane.f32.xlu0 %v765
  %v797 = vpop.xlane.xlu0 %796
  %798 = vadd.xlane.f32.xlu0 %v767
  %v799 = vpop.xlane.xlu0 %798
  %800 = vadd.xlane.f32.xlu0 %v769
  %v801 = vpop.xlane.xlu0 %800
  %v802 = vlog2.pop %v771
  %v803 = vmul.f32 %v802, 0.6931472
  %v804 = vlog2.pop %v773
  %v805 = vmul.f32 %v804, 0.6931472
  %v806 = vlog2.pop %v775
  %v807 = vmul.f32 %v806, 0.6931472
  %v808 = vlog2.pop %v777
  %v809 = vmul.f32 %v808, 0.6931472
  %v810 = vlog2.pop %v779
  %v811 = vmul.f32 %v810, 0.6931472
  %v812 = vlog2.pop %v781
  %v813 = vmul.f32 %v812, 0.6931472
  %v814 = vlog2.pop %v783
  %v815 = vmul.f32 %v814, 0.6931472
  %v816 = vlog2.pop %v785
  %v817 = vmul.f32 %v816, 0.6931472
  %v818 = vlog2.pop %v787
  %v819 = vmul.f32 %v818, 0.6931472
  %v820 = vlog2.pop %v789
  %v821 = vmul.f32 %v820, 0.6931472
  %v822 = vlog2.pop %v791
  %v823 = vmul.f32 %v822, 0.6931472
  %v824 = vlog2.pop %v793
  %v825 = vmul.f32 %v824, 0.6931472
  %v826 = vlog2.pop %v795
  %v827 = vmul.f32 %v826, 0.6931472
  %v828 = vlog2.pop %v797
  %v829 = vmul.f32 %v828, 0.6931472
  %v830 = vlog2.pop %v799
  %v831 = vmul.f32 %v830, 0.6931472
  %v832 = vlog2.pop %v801
  %v833 = vmul.f32 %v832, 0.6931472
  %v834 = vsub.f32 %v722, %v803
  %v835 = vsub.f32 %v723, %v805
  %v836 = vsub.f32 %v724, %v807
  %v837 = vsub.f32 %v725, %v809
  %v838 = vsub.f32 %v726, %v811
  %v839 = vsub.f32 %v727, %v813
  %v840 = vsub.f32 %v728, %v815
  %v841 = vsub.f32 %v729, %v817
  %v842 = vsub.f32 %v730, %v819
  %v843 = vsub.f32 %v731, %v821
  %v844 = vsub.f32 %v732, %v823
  %v845 = vsub.f32 %v733, %v825
  %v846 = vsub.f32 %v734, %v827
  %v847 = vsub.f32 %v735, %v829
  %v848 = vsub.f32 %v736, %v831
  %v849 = vsub.f32 %v737, %v833
  %850 = vst [vmem:[%s7] sm:$0xff] %v834
  %851 = vst [vmem:[%s7 + $0x8] sm:$0xff] %v835
  %852 = vst [vmem:[%s7 + $0x10] sm:$0xff] %v836
  %853 = vst [vmem:[%s7 + $0x18] sm:$0xff] %v837
  %854 = vst [vmem:[%s7 + $0x20] sm:$0xff] %v838
  %855 = vst [vmem:[%s7 + $0x28] sm:$0xff] %v839
  %856 = vst [vmem:[%s7 + $0x30] sm:$0xff] %v840
  %857 = vst [vmem:[%s7 + $0x38] sm:$0xff] %v841
  %858 = vst [vmem:[%s7 + $0x40] sm:$0xff] %v842
  %859 = vst [vmem:[%s7 + $0x48] sm:$0xff] %v843
  %860 = vst [vmem:[%s7 + $0x50] sm:$0xff] %v844
  %861 = vst [vmem:[%s7 + $0x58] sm:$0xff] %v845
  %862 = vst [vmem:[%s7 + $0x60] sm:$0xff] %v846
  %863 = vst [vmem:[%s7 + $0x68] sm:$0xff] %v847
  %864 = vst [vmem:[%s7 + $0x70] sm:$0xff] %v848
  %865 = vst [vmem:[%s7 + $0x78] sm:$0xff] %v849
  // Predicated region
  $region30: #{gin2_forward.5} parent=0 // pred_check
    _
  $region31: #{gin2_forward.5} parent=0 // pred_check_branch
    %867 = sbr.rel (0) target = $region33
  $region32: #{gin2_forward.5} parent=0 // pred_region
    _
  $region33: #{gin2_forward.5} parent=0 // pred_fallthru
    _
  // Predicated region
  $region34: #{gin2_forward.5} parent=0 // pred_check
    _
  $region35: #{gin2_forward.5} parent=0 // pred_check_branch
    %869 = sbr.rel (0) target = $region37
  $region36: #{gin2_forward.5} parent=0 // pred_region
    _
  $region37: #{gin2_forward.5} parent=0 // pred_fallthru
    _

</llo_original>
